<compile_context>
chip_gen: v5e
topology: v5e:2x2
jax: 0.10.0
libtpu: 0.0.40
codegen_flags: <defaults>
</compile_context>

<pallas_src>
import functools

import jax
import jax.numpy as jnp
from jax.experimental import pallas as pl
from jax.experimental.pallas import tpu as pltpu

# ---- module hyper-parameters (small, consistent with FFTBlock.__init__) ----
B = 2            # batch
S = 16           # sequence length
D_MODEL = 32
D_INNER = 64
N_HEAD = 2
D_K = 16
D_V = 16
KERNEL = (9, 1)      # conv kernel sizes of w_1 / w_2
PADDING = (4, 0)     # conv paddings of w_1 / w_2
EPS = 1e-5           # nn.LayerNorm default eps
PAD1 = PADDING[0]


def fft_block_kernel(
    x_ref, mask_ref, npad_ref,
    wqkv_ref, bqkv_ref, fcw_ref, fcb_ref, ln1g_ref, ln1b_ref,
    w1_ref, b1_ref, w2_ref, b2_ref, ln2g_ref, ln2b_ref,
    out_ref, attn_ref,
    pad_buf,
    *, n_batch,
):
    # Weights loaded ONCE per grid step (hoisted out of the per-batch loop; JAX
    # does not CSE repeated ref loads / broadcasts).
    wqkv = wqkv_ref[...]   # (D, 3*H*Dk), 1/sqrt(d_k) already folded into the Q block
    bqkv = bqkv_ref[...]   # (1, 3*H*Dk)
    fcw = fcw_ref[...]     # (H*Dv, D)
    fcb = fcb_ref[...]     # (1, D)
    ln1g = ln1g_ref[...]
    ln1b = ln1b_ref[...]
    w1f = w1_ref[...]      # (K*D, D_INNER)  -- im2col conv1 weight
    b1 = b1_ref[...]
    w2 = w2_ref[...]       # (D_INNER, D)
    b2 = b2_ref[...]
    ln2g = ln2g_ref[...]
    ln2b = ln2b_ref[...]

    # Pad rows of the conv scratch are zeroed once per invocation; they are never
    # touched by the per-batch store of y, so this is always safe (incl. megacore).
    zero_pad = jnp.zeros((PAD1, D_MODEL), jnp.float32)
    pad_buf[pl.ds(0, PAD1), :] = zero_pad
    pad_buf[pl.ds(PAD1 + S, PAD1), :] = zero_pad

    HD = N_HEAD * D_K

    for bb in range(n_batch):          # static unroll: 1 (v7x) or B (single-TC chips)
        x = x_ref[bb]                  # (S, D)
        npad = npad_ref[bb]            # (S, 1)
        # Additive mask bias hoisted out of the head loop (one compare+select total).
        mask_bias = jnp.where(mask_ref[bb] > 0.5, -jnp.inf, 0.0)   # (S, S)

        # ---- multi-head self attention: fused QKV projection (single matmul) ----
        qkv = jnp.dot(x, wqkv, preferred_element_type=jnp.float32) + bqkv   # (S, 3*H*Dk)

        # Output projection accumulated per head (no concat of head outputs).
        y = x + fcb
        attn_heads = []
        for h in range(N_HEAD):        # static unrolled loop (n_head small)
            qh = qkv[:, h * D_K:(h + 1) * D_K]
            kh = qkv[:, HD + h * D_K:HD + (h + 1) * D_K]
            vh = qkv[:, 2 * HD + h * D_V:2 * HD + (h + 1) * D_V]
            scores = jnp.dot(qh, kh.T, preferred_element_type=jnp.float32) + mask_bias
            m = jnp.max(scores, axis=-1, keepdims=True)
            e = jnp.exp(scores - m)
            p = e / jnp.sum(e, axis=-1, keepdims=True)
            attn_heads.append(p)
            head = jnp.dot(p, vh, preferred_element_type=jnp.float32)
            y = y + jnp.dot(head, fcw[h * D_V:(h + 1) * D_V, :],
                            preferred_element_type=jnp.float32)
        # Both heads written with a single store: (S, n_head*S).
        attn_ref[bb] = jnp.concatenate(attn_heads, axis=-1)

        # residual + LayerNorm 1 (+ dropout = identity) + non_pad_mask
        mean = jnp.mean(y, axis=-1, keepdims=True)
        var = jnp.mean((y - mean) ** 2, axis=-1, keepdims=True)
        y = (y - mean) * jax.lax.rsqrt(var + EPS) * ln1g + ln1b
        y = y * npad

        # ---- position-wise FFN: Conv1d(k=9) as ONE im2col matmul, then k=1 matmul ----
        pad_buf[pl.ds(PAD1, S), :] = y                       # middle rows only
        cols = jnp.concatenate(
            [pad_buf[pl.ds(t, S), :] for t in range(KERNEL[0])], axis=-1)   # (S, K*D)
        h_act = jnp.maximum(
            jnp.dot(cols, w1f, preferred_element_type=jnp.float32) + b1, 0.0)   # ReLU
        ffn = jnp.dot(h_act, w2, preferred_element_type=jnp.float32) + b2

        z = ffn + y                                          # residual
        mean2 = jnp.mean(z, axis=-1, keepdims=True)
        var2 = jnp.mean((z - mean2) ** 2, axis=-1, keepdims=True)
        z = (z - mean2) * jax.lax.rsqrt(var2 + EPS) * ln2g + ln2b
        out_ref[bb] = z * npad                               # non_pad_mask after FFN


def _prep_params(params):
    """Fuse QKV weights (fold 1/sqrt(d_k) into Q) and reshape conv1 weight for im2col."""
    (wq, bq, wk, bk, wv, bv, fcw, fcb, ln1g, ln1b, w1, b1, w2, b2, ln2g, ln2b) = params
    inv_t = 1.0 / (D_K ** 0.5)
    wqkv = jnp.concatenate([wq * inv_t, wk, wv], axis=1)     # (D, 3*H*Dk)
    bqkv = jnp.concatenate([bq * inv_t, bk, bv], axis=1)     # (1, 3*H*Dk)
    w1f = w1.reshape(KERNEL[0] * D_MODEL, D_INNER)           # tap-major im2col layout
    return (wqkv, bqkv, fcw, fcb, ln1g, ln1b, w1f, b1, w2, b2, ln2g, ln2b)


def _pick_batch_block() -> int:
    """Batch elements processed per grid step.

    Known single-TC chips (v5e / v6e): fold the whole batch into one grid step to
    avoid ~600-cycle per-step overhead. Otherwise (e.g. v7x with 2 TensorCores):
    keep a size-B 'parallel' grid so batch elements shard across cores.
    """
    try:
        kind = jax.devices()[0].device_kind.lower()
    except Exception:
        return 1
    single_tc = ("v5 lite" in kind or "v5e" in kind or
                 "v6 lite" in kind or "v6e" in kind)
    return B if single_tc else 1


def fft_block(enc_input, slf_attn_mask, non_pad_mask, params):
    """enc_input: (B,S,D) f32; slf_attn_mask: (B,S,S) f32 (1=mask); non_pad_mask: (B,S,1)."""
    fused = _prep_params(params)
    bb = _pick_batch_block()
    grid = (B // bb,)

    full = lambda shape: pl.BlockSpec(shape, lambda b: (0,) * len(shape))
    in_specs = [
        pl.BlockSpec((bb, S, D_MODEL), lambda b: (b, 0, 0)),   # enc_input
        pl.BlockSpec((bb, S, S), lambda b: (b, 0, 0)),         # slf_attn_mask
        pl.BlockSpec((bb, S, 1), lambda b: (b, 0, 0)),         # non_pad_mask
    ] + [full(p.shape) for p in fused]
    out_specs = [
        pl.BlockSpec((bb, S, D_MODEL), lambda b: (b, 0, 0)),
        pl.BlockSpec((bb, S, N_HEAD * S), lambda b: (b, 0, 0)),
    ]

    out, attn_raw = pl.pallas_call(
        functools.partial(fft_block_kernel, n_batch=bb),
        out_shape=(
            jax.ShapeDtypeStruct((B, S, D_MODEL), jnp.float32),
            jax.ShapeDtypeStruct((B, S, N_HEAD * S), jnp.float32),
        ),
        grid_spec=pltpu.PrefetchScalarGridSpec(
            num_scalar_prefetch=0,
            grid=grid,
            in_specs=in_specs,
            out_specs=out_specs,
            scratch_shapes=[pltpu.VMEM((S + 2 * PAD1, D_MODEL), jnp.float32)],
        ),
        compiler_params=pltpu.CompilerParams(dimension_semantics=("parallel",)),
    )(enc_input, slf_attn_mask, non_pad_mask, *fused)

    # PyTorch returns attn as (n_head*B, S, S), head-major.
    attn_pt = attn_raw.reshape(B, S, N_HEAD, S).transpose(2, 0, 1, 3).reshape(N_HEAD * B, S, S)
    return out, attn_pt


def reference(enc_input, slf_attn_mask, non_pad_mask, params):
    """Pure-JAX reference mirroring the PyTorch forward (eval mode)."""
    (wq, bq, wk, bk, wv, bv, fcw, fcb, ln1g, ln1b, w1, b1, w2, b2, ln2g, ln2b) = params
    def ln(x, g, beta):
        mu = jnp.mean(x, -1, keepdims=True)
        var = jnp.mean((x - mu) ** 2, -1, keepdims=True)
        return (x - mu) * jax.lax.rsqrt(var + EPS) * g + beta
    x = enc_input
    q = x @ wq + bq; k = x @ wk + bk; v = x @ wv + bv
    outs, attns = [], []
    for h in range(N_HEAD):
        qh, kh, vh = (q[..., h*D_K:(h+1)*D_K], k[..., h*D_K:(h+1)*D_K], v[..., h*D_V:(h+1)*D_V])
        sc = jnp.einsum("bqd,bkd->bqk", qh, kh) / (D_K ** 0.5)
        sc = jnp.where(slf_attn_mask > 0.5, -jnp.inf, sc)
        p = jax.nn.softmax(sc, axis=-1)
        attns.append(p)
        outs.append(jnp.einsum("bqk,bkd->bqd", p, vh))
    y = ln(jnp.concatenate(outs, -1) @ fcw + fcb + x, ln1g, ln1b) * non_pad_mask
    ypad = jnp.pad(y, ((0, 0), (PAD1, PAD1), (0, 0)))
    h_act = sum(jnp.einsum("bsd,de->bse", ypad[:, t:t+S], w1[t]) for t in range(KERNEL[0]))
    h_act = jax.nn.relu(h_act + b1)
    z = ln(h_act @ w2 + b2 + y, ln2g, ln2b) * non_pad_mask
    attn_pt = jnp.stack(attns, 0).reshape(N_HEAD * B, S, S)
    return z, attn_pt


if __name__ == "__main__":
    key = jax.random.PRNGKey(0)
    ks = jax.random.split(key, 12)

    enc_input = jax.random.normal(ks[0], (B, S, D_MODEL), jnp.float32)

    # lengths [16, 12] -> masks, matching FastSpeech conventions
    lengths = jnp.array([S, 12])
    pos = jnp.arange(S)
    non_pad_mask = (pos[None, :] < lengths[:, None]).astype(jnp.float32)[..., None]  # (B,S,1)
    key_pad = (pos[None, :] >= lengths[:, None]).astype(jnp.float32)                 # (B,S)
    slf_attn_mask = jnp.broadcast_to(key_pad[:, None, :], (B, S, S)).astype(jnp.float32)

    scale = 0.1
    params = (
        scale * jax.random.normal(ks[1], (D_MODEL, N_HEAD * D_K)),      # wq (= W_qs.T)
        scale * jax.random.normal(ks[2], (1, N_HEAD * D_K)),            # bq
        scale * jax.random.normal(ks[3], (D_MODEL, N_HEAD * D_K)),      # wk
        scale * jax.random.normal(ks[4], (1, N_HEAD * D_K)),            # bk
        scale * jax.random.normal(ks[5], (D_MODEL, N_HEAD * D_V)),      # wv
        scale * jax.random.normal(ks[6], (1, N_HEAD * D_V)),            # bv
        scale * jax.random.normal(ks[7], (N_HEAD * D_V, D_MODEL)),      # fc_w (= fc.weight.T)
        scale * jax.random.normal(ks[8], (1, D_MODEL)),                 # fc_b
        jnp.ones((1, D_MODEL), jnp.float32),                            # ln1 gamma
        jnp.zeros((1, D_MODEL), jnp.float32),                           # ln1 beta
        scale * jax.random.normal(ks[9], (KERNEL[0], D_MODEL, D_INNER)),# conv1 w (tap,in,out)
        scale * jax.random.normal(ks[10], (1, D_INNER)),                # conv1 b
        scale * jax.random.normal(ks[11], (D_INNER, D_MODEL)),          # conv2 w (k=1)
        jnp.zeros((1, D_MODEL), jnp.float32),                           # conv2 b
        jnp.ones((1, D_MODEL), jnp.float32),                            # ln2 gamma
        jnp.zeros((1, D_MODEL), jnp.float32),                           # ln2 beta
    )
    params = tuple(p.astype(jnp.float32) for p in params)

    out, attn = fft_block(enc_input, slf_attn_mask, non_pad_mask, params)
    jax.block_until_ready((out, attn))

    ref_out, ref_attn = reference(enc_input, slf_attn_mask, non_pad_mask, params)
    assert jnp.allclose(out, ref_out, atol=1e-3, rtol=1e-3), "enc_output mismatch"
    assert jnp.allclose(attn, ref_attn, atol=1e-3, rtol=1e-3), "attention mismatch"

    print("KERNEL_OK")
</pallas_src>

<mosaic_0001>
module attributes {stable_mosaic.version = 11 : i64} {
  func.func @fft_block_kernel(%arg0: i32, %arg1: memref<1x16x32xf32, #tpu.memory_space<vmem>>, %arg2: memref<1x16x16xf32, #tpu.memory_space<vmem>>, %arg3: memref<1x16x1xf32, #tpu.memory_space<vmem>>, %arg4: memref<32x96xf32, #tpu.memory_space<vmem>>, %arg5: memref<1x96xf32, #tpu.memory_space<vmem>>, %arg6: memref<32x32xf32, #tpu.memory_space<vmem>>, %arg7: memref<1x32xf32, #tpu.memory_space<vmem>>, %arg8: memref<1x32xf32, #tpu.memory_space<vmem>>, %arg9: memref<1x32xf32, #tpu.memory_space<vmem>>, %arg10: memref<288x64xf32, #tpu.memory_space<vmem>>, %arg11: memref<1x64xf32, #tpu.memory_space<vmem>>, %arg12: memref<64x32xf32, #tpu.memory_space<vmem>>, %arg13: memref<1x32xf32, #tpu.memory_space<vmem>>, %arg14: memref<1x32xf32, #tpu.memory_space<vmem>>, %arg15: memref<1x32xf32, #tpu.memory_space<vmem>>, %arg16: memref<1x16x32xf32, #tpu.memory_space<vmem>>, %arg17: memref<1x16x32xf32, #tpu.memory_space<vmem>>, %arg18: memref<24x32xf32, #tpu.memory_space<vmem>>) attributes {dimension_semantics = [#tpu.dimension_semantics<parallel>], iteration_bounds = array<i64: 2>, scalar_prefetch = 0 : i64, scratch_operands = 1 : i64, tpu.core_type = #tpu.core_type<tc>, window_params = [{transform_indices = @transform_0, window_bounds = array<i64: 1, 16, 32>}, {transform_indices = @transform_1, window_bounds = array<i64: 1, 16, 16>}, {transform_indices = @transform_2, window_bounds = array<i64: 1, 16, 1>}, {pipeline_mode = #tpu.pipeline_mode<synchronous>, transform_indices = @transform_3, window_bounds = array<i64: 32, 96>}, {pipeline_mode = #tpu.pipeline_mode<synchronous>, transform_indices = @transform_4, window_bounds = array<i64: 1, 96>}, {pipeline_mode = #tpu.pipeline_mode<synchronous>, transform_indices = @transform_5, window_bounds = array<i64: 32, 32>}, {pipeline_mode = #tpu.pipeline_mode<synchronous>, transform_indices = @transform_6, window_bounds = array<i64: 1, 32>}, {pipeline_mode = #tpu.pipeline_mode<synchronous>, transform_indices = @transform_7, window_bounds = array<i64: 1, 32>}, {pipeline_mode = #tpu.pipeline_mode<synchronous>, transform_indices = @transform_8, window_bounds = array<i64: 1, 32>}, {pipeline_mode = #tpu.pipeline_mode<synchronous>, transform_indices = @transform_9, window_bounds = array<i64: 288, 64>}, {pipeline_mode = #tpu.pipeline_mode<synchronous>, transform_indices = @transform_10, window_bounds = array<i64: 1, 64>}, {pipeline_mode = #tpu.pipeline_mode<synchronous>, transform_indices = @transform_11, window_bounds = array<i64: 64, 32>}, {pipeline_mode = #tpu.pipeline_mode<synchronous>, transform_indices = @transform_12, window_bounds = array<i64: 1, 32>}, {pipeline_mode = #tpu.pipeline_mode<synchronous>, transform_indices = @transform_13, window_bounds = array<i64: 1, 32>}, {pipeline_mode = #tpu.pipeline_mode<synchronous>, transform_indices = @transform_14, window_bounds = array<i64: 1, 32>}, {transform_indices = @transform_15, window_bounds = array<i64: 1, 16, 32>}, {transform_indices = @transform_16, window_bounds = array<i64: 1, 16, 32>}]} {
    %c0 = arith.constant 0 : index
    %c0_0 = arith.constant 0 : index
    %0 = vector.load %arg4[%c0, %c0_0] : memref<32x96xf32, #tpu.memory_space<vmem>>, vector<32x96xf32>
    %c0_1 = arith.constant 0 : index
    %c0_2 = arith.constant 0 : index
    %1 = vector.load %arg5[%c0_1, %c0_2] : memref<1x96xf32, #tpu.memory_space<vmem>>, vector<1x96xf32>
    %c0_3 = arith.constant 0 : index
    %c0_4 = arith.constant 0 : index
    %2 = vector.load %arg6[%c0_3, %c0_4] : memref<32x32xf32, #tpu.memory_space<vmem>>, vector<32x32xf32>
    %c0_5 = arith.constant 0 : index
    %c0_6 = arith.constant 0 : index
    %3 = vector.load %arg7[%c0_5, %c0_6] : memref<1x32xf32, #tpu.memory_space<vmem>>, vector<1x32xf32>
    %c0_7 = arith.constant 0 : index
    %c0_8 = arith.constant 0 : index
    %4 = vector.load %arg8[%c0_7, %c0_8] : memref<1x32xf32, #tpu.memory_space<vmem>>, vector<1x32xf32>
    %c0_9 = arith.constant 0 : index
    %c0_10 = arith.constant 0 : index
    %5 = vector.load %arg9[%c0_9, %c0_10] : memref<1x32xf32, #tpu.memory_space<vmem>>, vector<1x32xf32>
    %c0_11 = arith.constant 0 : index
    %c0_12 = arith.constant 0 : index
    %6 = vector.load %arg10[%c0_11, %c0_12] : memref<288x64xf32, #tpu.memory_space<vmem>>, vector<288x64xf32>
    %c0_13 = arith.constant 0 : index
    %c0_14 = arith.constant 0 : index
    %7 = vector.load %arg11[%c0_13, %c0_14] : memref<1x64xf32, #tpu.memory_space<vmem>>, vector<1x64xf32>
    %c0_15 = arith.constant 0 : index
    %c0_16 = arith.constant 0 : index
    %8 = vector.load %arg12[%c0_15, %c0_16] : memref<64x32xf32, #tpu.memory_space<vmem>>, vector<64x32xf32>
    %c0_17 = arith.constant 0 : index
    %c0_18 = arith.constant 0 : index
    %9 = vector.load %arg13[%c0_17, %c0_18] : memref<1x32xf32, #tpu.memory_space<vmem>>, vector<1x32xf32>
    %c0_19 = arith.constant 0 : index
    %c0_20 = arith.constant 0 : index
    %10 = vector.load %arg14[%c0_19, %c0_20] : memref<1x32xf32, #tpu.memory_space<vmem>>, vector<1x32xf32>
    %c0_21 = arith.constant 0 : index
    %c0_22 = arith.constant 0 : index
    %11 = vector.load %arg15[%c0_21, %c0_22] : memref<1x32xf32, #tpu.memory_space<vmem>>, vector<1x32xf32>
    %cst = arith.constant 0.000000e+00 : f32
    %12 = vector.broadcast %cst : f32 to vector<4x32xf32>
    %c0_23 = arith.constant 0 : index
    %c0_24 = arith.constant 0 : index
    %13 = vector.load %arg18[%c0_23, %c0_24] : memref<24x32xf32, #tpu.memory_space<vmem>>, vector<4x32xf32>
    tpu.vector_store %arg18[%c0_23, %c0_24], %12 {strides = array<i32>} : memref<24x32xf32, #tpu.memory_space<vmem>>, vector<4x32xf32>,
    %c20 = arith.constant 20 : index
    %c0_25 = arith.constant 0 : index
    %14 = vector.load %arg18[%c20, %c0_25] : memref<24x32xf32, #tpu.memory_space<vmem>>, vector<4x32xf32>
    tpu.vector_store %arg18[%c20, %c0_25], %12 {strides = array<i32>} : memref<24x32xf32, #tpu.memory_space<vmem>>, vector<4x32xf32>,
    %c0_26 = arith.constant 0 : index
    %c0_27 = arith.constant 0 : index
    %c0_28 = arith.constant 0 : index
    %15 = vector.load %arg1[%c0_26, %c0_27, %c0_28] : memref<1x16x32xf32, #tpu.memory_space<vmem>>, vector<1x16x32xf32>
    %16 = vector.shape_cast %15 : vector<1x16x32xf32> to vector<16x32xf32>
    %c0_29 = arith.constant 0 : index
    %c0_30 = arith.constant 0 : index
    %c0_31 = arith.constant 0 : index
    %17 = vector.load %arg3[%c0_29, %c0_30, %c0_31] : memref<1x16x1xf32, #tpu.memory_space<vmem>>, vector<1x16x1xf32>
    %18 = vector.shape_cast %17 : vector<1x16x1xf32> to vector<16x1xf32>
    %c0_32 = arith.constant 0 : index
    %c0_33 = arith.constant 0 : index
    %c0_34 = arith.constant 0 : index
    %19 = vector.load %arg2[%c0_32, %c0_33, %c0_34] : memref<1x16x16xf32, #tpu.memory_space<vmem>>, vector<1x16x16xf32>
    %20 = vector.shape_cast %19 : vector<1x16x16xf32> to vector<16x16xf32>
    %cst_35 = arith.constant 5.000000e-01 : f32
    %21 = vector.broadcast %cst_35 : f32 to vector<16x16xf32>
    %22 = arith.cmpf ogt, %20, %21 : vector<16x16xf32>
    %cst_36 = arith.constant 0xFF800000 : f32
    %cst_37 = arith.constant 0.000000e+00 : f32
    %23 = vector.broadcast %cst_36 : f32 to vector<16x16xf32>
    %24 = vector.broadcast %cst_37 : f32 to vector<16x16xf32>
    %25 = arith.select %22, %23, %24 : vector<16x16xi1>, vector<16x16xf32>
    %cst_38 = arith.constant dense<0.000000e+00> : vector<16x96xf32>
    %26 = tpu.matmul %16, %0, %cst_38 {dimension_numbers = #tpu.dot_dimension_numbers<[1], [0], [0], [1], [0, 0, 1, 1], [], []>} : vector<16x32xf32>, vector<32x96xf32>, vector<16x96xf32> -> vector<16x96xf32>
    %27 = vector.broadcast %1 : vector<1x96xf32> to vector<16x96xf32>
    %28 = arith.addf %26, %27 : vector<16x96xf32>
    %29 = vector.broadcast %3 : vector<1x32xf32> to vector<16x32xf32>
    %30 = arith.addf %16, %29 : vector<16x32xf32>
    %31 = vector.extract_strided_slice %28 {offsets = [0, 0], sizes = [16, 16], strides = [1, 1]} : vector<16x96xf32> to vector<16x16xf32>
    %32 = vector.extract_strided_slice %28 {offsets = [0, 32], sizes = [16, 16], strides = [1, 1]} : vector<16x96xf32> to vector<16x16xf32>
    %33 = vector.extract_strided_slice %28 {offsets = [0, 64], sizes = [16, 16], strides = [1, 1]} : vector<16x96xf32> to vector<16x16xf32>
    %34 = tpu.transpose %32, [1, 0] : vector<16x16xf32> -> vector<16x16xf32>
    %cst_39 = arith.constant dense<0.000000e+00> : vector<16x16xf32>
    %35 = tpu.matmul %31, %34, %cst_39 {dimension_numbers = #tpu.dot_dimension_numbers<[1], [0], [0], [1], [0, 0, 1, 1], [], []>} : vector<16x16xf32>, vector<16x16xf32>, vector<16x16xf32> -> vector<16x16xf32>
    %36 = arith.addf %35, %25 : vector<16x16xf32>
    %cst_40 = arith.constant dense<0xFF800000> : vector<16xf32>
    %37 = vector.multi_reduction <maximumf>, %36, %cst_40 [1] : vector<16x16xf32> to vector<16xf32>
    %38 = vector.shape_cast %37 : vector<16xf32> to vector<16x1xf32>
    %39 = vector.broadcast %38 : vector<16x1xf32> to vector<16x16xf32>
    %40 = arith.subf %36, %39 : vector<16x16xf32>
    %41 = math.exp %40 : vector<16x16xf32>
    %cst_41 = arith.constant dense<0.000000e+00> : vector<16xf32>
    %42 = vector.multi_reduction <add>, %41, %cst_41 [1] : vector<16x16xf32> to vector<16xf32>
    %43 = vector.shape_cast %42 : vector<16xf32> to vector<16x1xf32>
    %44 = vector.broadcast %43 : vector<16x1xf32> to vector<16x16xf32>
    %45 = arith.divf %41, %44 : vector<16x16xf32>
    %cst_42 = arith.constant dense<0.000000e+00> : vector<16x16xf32>
    %46 = tpu.matmul %45, %33, %cst_42 {dimension_numbers = #tpu.dot_dimension_numbers<[1], [0], [0], [1], [0, 0, 1, 1], [], []>} : vector<16x16xf32>, vector<16x16xf32>, vector<16x16xf32> -> vector<16x16xf32>
    %47 = vector.extract_strided_slice %2 {offsets = [0, 0], sizes = [16, 32], strides = [1, 1]} : vector<32x32xf32> to vector<16x32xf32>
    %cst_43 = arith.constant dense<0.000000e+00> : vector<16x32xf32>
    %48 = tpu.matmul %46, %47, %cst_43 {dimension_numbers = #tpu.dot_dimension_numbers<[1], [0], [0], [1], [0, 0, 1, 1], [], []>} : vector<16x16xf32>, vector<16x32xf32>, vector<16x32xf32> -> vector<16x32xf32>
    %49 = arith.addf %30, %48 : vector<16x32xf32>
    %50 = vector.extract_strided_slice %28 {offsets = [0, 16], sizes = [16, 16], strides = [1, 1]} : vector<16x96xf32> to vector<16x16xf32>
    %51 = vector.extract_strided_slice %28 {offsets = [0, 48], sizes = [16, 16], strides = [1, 1]} : vector<16x96xf32> to vector<16x16xf32>
    %52 = vector.extract_strided_slice %28 {offsets = [0, 80], sizes = [16, 16], strides = [1, 1]} : vector<16x96xf32> to vector<16x16xf32>
    %53 = tpu.transpose %51, [1, 0] : vector<16x16xf32> -> vector<16x16xf32>
    %cst_44 = arith.constant dense<0.000000e+00> : vector<16x16xf32>
    %54 = tpu.matmul %50, %53, %cst_44 {dimension_numbers = #tpu.dot_dimension_numbers<[1], [0], [0], [1], [0, 0, 1, 1], [], []>} : vector<16x16xf32>, vector<16x16xf32>, vector<16x16xf32> -> vector<16x16xf32>
    %55 = arith.addf %54, %25 : vector<16x16xf32>
    %cst_45 = arith.constant dense<0xFF800000> : vector<16xf32>
    %56 = vector.multi_reduction <maximumf>, %55, %cst_45 [1] : vector<16x16xf32> to vector<16xf32>
    %57 = vector.shape_cast %56 : vector<16xf32> to vector<16x1xf32>
    %58 = vector.broadcast %57 : vector<16x1xf32> to vector<16x16xf32>
    %59 = arith.subf %55, %58 : vector<16x16xf32>
    %60 = math.exp %59 : vector<16x16xf32>
    %cst_46 = arith.constant dense<0.000000e+00> : vector<16xf32>
    %61 = vector.multi_reduction <add>, %60, %cst_46 [1] : vector<16x16xf32> to vector<16xf32>
    %62 = vector.shape_cast %61 : vector<16xf32> to vector<16x1xf32>
    %63 = vector.broadcast %62 : vector<16x1xf32> to vector<16x16xf32>
    %64 = arith.divf %60, %63 : vector<16x16xf32>
    %cst_47 = arith.constant dense<0.000000e+00> : vector<16x16xf32>
    %65 = tpu.matmul %64, %52, %cst_47 {dimension_numbers = #tpu.dot_dimension_numbers<[1], [0], [0], [1], [0, 0, 1, 1], [], []>} : vector<16x16xf32>, vector<16x16xf32>, vector<16x16xf32> -> vector<16x16xf32>
    %66 = vector.extract_strided_slice %2 {offsets = [16, 0], sizes = [16, 32], strides = [1, 1]} : vector<32x32xf32> to vector<16x32xf32>
    %cst_48 = arith.constant dense<0.000000e+00> : vector<16x32xf32>
    %67 = tpu.matmul %65, %66, %cst_48 {dimension_numbers = #tpu.dot_dimension_numbers<[1], [0], [0], [1], [0, 0, 1, 1], [], []>} : vector<16x16xf32>, vector<16x32xf32>, vector<16x32xf32> -> vector<16x32xf32>
    %68 = arith.addf %49, %67 : vector<16x32xf32>
    %69 = tpu.concatenate %45, %64 in 1 : vector<16x16xf32>, vector<16x16xf32> -> vector<16x32xf32>
    %c0_49 = arith.constant 0 : index
    %c0_50 = arith.constant 0 : index
    %c0_51 = arith.constant 0 : index
    %70 = vector.load %arg17[%c0_49, %c0_50, %c0_51] : memref<1x16x32xf32, #tpu.memory_space<vmem>>, vector<1x16x32xf32>
    %71 = vector.shape_cast %70 : vector<1x16x32xf32> to vector<16x32xf32>
    %72 = vector.shape_cast %69 : vector<16x32xf32> to vector<1x16x32xf32>
    tpu.vector_store %arg17[%c0_49, %c0_50, %c0_51], %72 {strides = array<i32>} : memref<1x16x32xf32, #tpu.memory_space<vmem>>, vector<1x16x32xf32>,
    %cst_52 = arith.constant dense<0.000000e+00> : vector<16xf32>
    %73 = vector.multi_reduction <add>, %68, %cst_52 [1] : vector<16x32xf32> to vector<16xf32>
    %74 = vector.shape_cast %73 : vector<16xf32> to vector<16x1xf32>
    %cst_53 = arith.constant 3.200000e+01 : f32
    %75 = vector.broadcast %cst_53 : f32 to vector<16x1xf32>
    %76 = arith.divf %74, %75 : vector<16x1xf32>
    %77 = vector.broadcast %76 : vector<16x1xf32> to vector<16x32xf32>
    %78 = arith.subf %68, %77 : vector<16x32xf32>
    %79 = arith.mulf %78, %78 : vector<16x32xf32>
    %cst_54 = arith.constant dense<0.000000e+00> : vector<16xf32>
    %80 = vector.multi_reduction <add>, %79, %cst_54 [1] : vector<16x32xf32> to vector<16xf32>
    %81 = vector.shape_cast %80 : vector<16xf32> to vector<16x1xf32>
    %cst_55 = arith.constant 3.200000e+01 : f32
    %82 = vector.broadcast %cst_55 : f32 to vector<16x1xf32>
    %83 = arith.divf %81, %82 : vector<16x1xf32>
    %84 = vector.broadcast %76 : vector<16x1xf32> to vector<16x32xf32>
    %85 = arith.subf %68, %84 : vector<16x32xf32>
    %cst_56 = arith.constant 9.99999974E-6 : f32
    %86 = vector.broadcast %cst_56 : f32 to vector<16x1xf32>
    %87 = arith.addf %83, %86 : vector<16x1xf32>
    %88 = math.rsqrt %87 : vector<16x1xf32>
    %89 = vector.broadcast %88 : vector<16x1xf32> to vector<16x32xf32>
    %90 = arith.mulf %85, %89 : vector<16x32xf32>
    %91 = vector.broadcast %4 : vector<1x32xf32> to vector<16x32xf32>
    %92 = arith.mulf %90, %91 : vector<16x32xf32>
    %93 = vector.broadcast %5 : vector<1x32xf32> to vector<16x32xf32>
    %94 = arith.addf %92, %93 : vector<16x32xf32>
    %95 = vector.broadcast %18 : vector<16x1xf32> to vector<16x32xf32>
    %96 = arith.mulf %94, %95 : vector<16x32xf32>
    %c4 = arith.constant 4 : index
    %c0_57 = arith.constant 0 : index
    %97 = vector.load %arg18[%c4, %c0_57] : memref<24x32xf32, #tpu.memory_space<vmem>>, vector<16x32xf32>
    tpu.vector_store %arg18[%c4, %c0_57], %96 {strides = array<i32>} : memref<24x32xf32, #tpu.memory_space<vmem>>, vector<16x32xf32>,
    %c0_58 = arith.constant 0 : index
    %c0_59 = arith.constant 0 : index
    %98 = vector.load %arg18[%c0_58, %c0_59] : memref<24x32xf32, #tpu.memory_space<vmem>>, vector<16x32xf32>
    %c1 = arith.constant 1 : index
    %c0_60 = arith.constant 0 : index
    %99 = vector.load %arg18[%c1, %c0_60] : memref<24x32xf32, #tpu.memory_space<vmem>>, vector<16x32xf32>
    %c2 = arith.constant 2 : index
    %c0_61 = arith.constant 0 : index
    %100 = vector.load %arg18[%c2, %c0_61] : memref<24x32xf32, #tpu.memory_space<vmem>>, vector<16x32xf32>
    %c3 = arith.constant 3 : index
    %c0_62 = arith.constant 0 : index
    %101 = vector.load %arg18[%c3, %c0_62] : memref<24x32xf32, #tpu.memory_space<vmem>>, vector<16x32xf32>
    %c4_63 = arith.constant 4 : index
    %c0_64 = arith.constant 0 : index
    %102 = vector.load %arg18[%c4_63, %c0_64] : memref<24x32xf32, #tpu.memory_space<vmem>>, vector<16x32xf32>
    %c5 = arith.constant 5 : index
    %c0_65 = arith.constant 0 : index
    %103 = vector.load %arg18[%c5, %c0_65] : memref<24x32xf32, #tpu.memory_space<vmem>>, vector<16x32xf32>
    %c6 = arith.constant 6 : index
    %c0_66 = arith.constant 0 : index
    %104 = vector.load %arg18[%c6, %c0_66] : memref<24x32xf32, #tpu.memory_space<vmem>>, vector<16x32xf32>
    %c7 = arith.constant 7 : index
    %c0_67 = arith.constant 0 : index
    %105 = vector.load %arg18[%c7, %c0_67] : memref<24x32xf32, #tpu.memory_space<vmem>>, vector<16x32xf32>
    %c8 = arith.constant 8 : index
    %c0_68 = arith.constant 0 : index
    %106 = vector.load %arg18[%c8, %c0_68] : memref<24x32xf32, #tpu.memory_space<vmem>>, vector<16x32xf32>
    %107 = tpu.concatenate %98, %99, %100, %101, %102, %103, %104, %105, %106 in 1 : vector<16x32xf32>, vector<16x32xf32>, vector<16x32xf32>, vector<16x32xf32>, vector<16x32xf32>, vector<16x32xf32>, vector<16x32xf32>, vector<16x32xf32>, vector<16x32xf32> -> vector<16x288xf32>
    %cst_69 = arith.constant dense<0.000000e+00> : vector<16x64xf32>
    %108 = tpu.matmul %107, %6, %cst_69 {dimension_numbers = #tpu.dot_dimension_numbers<[1], [0], [0], [1], [0, 0, 1, 1], [], []>} : vector<16x288xf32>, vector<288x64xf32>, vector<16x64xf32> -> vector<16x64xf32>
    %109 = vector.broadcast %7 : vector<1x64xf32> to vector<16x64xf32>
    %110 = arith.addf %108, %109 : vector<16x64xf32>
    %cst_70 = arith.constant 0.000000e+00 : f32
    %111 = vector.broadcast %cst_70 : f32 to vector<16x64xf32>
    %112 = arith.maximumf %110, %111 : vector<16x64xf32>
    %cst_71 = arith.constant dense<0.000000e+00> : vector<16x32xf32>
    %113 = tpu.matmul %112, %8, %cst_71 {dimension_numbers = #tpu.dot_dimension_numbers<[1], [0], [0], [1], [0, 0, 1, 1], [], []>} : vector<16x64xf32>, vector<64x32xf32>, vector<16x32xf32> -> vector<16x32xf32>
    %114 = vector.broadcast %9 : vector<1x32xf32> to vector<16x32xf32>
    %115 = arith.addf %113, %114 : vector<16x32xf32>
    %116 = arith.addf %115, %96 : vector<16x32xf32>
    %cst_72 = arith.constant dense<0.000000e+00> : vector<16xf32>
    %117 = vector.multi_reduction <add>, %116, %cst_72 [1] : vector<16x32xf32> to vector<16xf32>
    %118 = vector.shape_cast %117 : vector<16xf32> to vector<16x1xf32>
    %cst_73 = arith.constant 3.200000e+01 : f32
    %119 = vector.broadcast %cst_73 : f32 to vector<16x1xf32>
    %120 = arith.divf %118, %119 : vector<16x1xf32>
    %121 = vector.broadcast %120 : vector<16x1xf32> to vector<16x32xf32>
    %122 = arith.subf %116, %121 : vector<16x32xf32>
    %123 = arith.mulf %122, %122 : vector<16x32xf32>
    %cst_74 = arith.constant dense<0.000000e+00> : vector<16xf32>
    %124 = vector.multi_reduction <add>, %123, %cst_74 [1] : vector<16x32xf32> to vector<16xf32>
    %125 = vector.shape_cast %124 : vector<16xf32> to vector<16x1xf32>
    %cst_75 = arith.constant 3.200000e+01 : f32
    %126 = vector.broadcast %cst_75 : f32 to vector<16x1xf32>
    %127 = arith.divf %125, %126 : vector<16x1xf32>
    %128 = vector.broadcast %120 : vector<16x1xf32> to vector<16x32xf32>
    %129 = arith.subf %116, %128 : vector<16x32xf32>
    %cst_76 = arith.constant 9.99999974E-6 : f32
    %130 = vector.broadcast %cst_76 : f32 to vector<16x1xf32>
    %131 = arith.addf %127, %130 : vector<16x1xf32>
    %132 = math.rsqrt %131 : vector<16x1xf32>
    %133 = vector.broadcast %132 : vector<16x1xf32> to vector<16x32xf32>
    %134 = arith.mulf %129, %133 : vector<16x32xf32>
    %135 = vector.broadcast %10 : vector<1x32xf32> to vector<16x32xf32>
    %136 = arith.mulf %134, %135 : vector<16x32xf32>
    %137 = vector.broadcast %11 : vector<1x32xf32> to vector<16x32xf32>
    %138 = arith.addf %136, %137 : vector<16x32xf32>
    %139 = vector.broadcast %18 : vector<16x1xf32> to vector<16x32xf32>
    %140 = arith.mulf %138, %139 : vector<16x32xf32>
    %c0_77 = arith.constant 0 : index
    %c0_78 = arith.constant 0 : index
    %c0_79 = arith.constant 0 : index
    %141 = vector.load %arg16[%c0_77, %c0_78, %c0_79] : memref<1x16x32xf32, #tpu.memory_space<vmem>>, vector<1x16x32xf32>
    %142 = vector.shape_cast %141 : vector<1x16x32xf32> to vector<16x32xf32>
    %143 = vector.shape_cast %140 : vector<16x32xf32> to vector<1x16x32xf32>
    tpu.vector_store %arg16[%c0_77, %c0_78, %c0_79], %143 {strides = array<i32>} : memref<1x16x32xf32, #tpu.memory_space<vmem>>, vector<1x16x32xf32>,
    return
  }
  func.func @transform_0(%arg0: i32) -> (i32, i32, i32) {
    %c0_i32 = arith.constant 0 : i32
    %c0_i32_0 = arith.constant 0 : i32
    %c0_i32_1 = arith.constant 0 : i32
    return %arg0, %c0_i32, %c0_i32_0 : i32, i32, i32
  }
  func.func @transform_1(%arg0: i32) -> (i32, i32, i32) {
    %c0_i32 = arith.constant 0 : i32
    %c0_i32_0 = arith.constant 0 : i32
    %c0_i32_1 = arith.constant 0 : i32
    return %arg0, %c0_i32, %c0_i32_0 : i32, i32, i32
  }
  func.func @transform_2(%arg0: i32) -> (i32, i32, i32) {
    %c0_i32 = arith.constant 0 : i32
    %c0_i32_0 = arith.constant 0 : i32
    %c0_i32_1 = arith.constant 0 : i32
    return %arg0, %c0_i32, %c0_i32_0 : i32, i32, i32
  }
  func.func @transform_3(%arg0: i32) -> (i32, i32) {
    %c0_i32 = arith.constant 0 : i32
    %c0_i32_0 = arith.constant 0 : i32
    %c0_i32_1 = arith.constant 0 : i32
    return %c0_i32, %c0_i32_0 : i32, i32
  }
  func.func @transform_4(%arg0: i32) -> (i32, i32) {
    %c0_i32 = arith.constant 0 : i32
    %c0_i32_0 = arith.constant 0 : i32
    %c0_i32_1 = arith.constant 0 : i32
    return %c0_i32, %c0_i32_0 : i32, i32
  }
  func.func @transform_5(%arg0: i32) -> (i32, i32) {
    %c0_i32 = arith.constant 0 : i32
    %c0_i32_0 = arith.constant 0 : i32
    %c0_i32_1 = arith.constant 0 : i32
    return %c0_i32, %c0_i32_0 : i32, i32
  }
  func.func @transform_6(%arg0: i32) -> (i32, i32) {
    %c0_i32 = arith.constant 0 : i32
    %c0_i32_0 = arith.constant 0 : i32
    %c0_i32_1 = arith.constant 0 : i32
    return %c0_i32, %c0_i32_0 : i32, i32
  }
  func.func @transform_7(%arg0: i32) -> (i32, i32) {
    %c0_i32 = arith.constant 0 : i32
    %c0_i32_0 = arith.constant 0 : i32
    %c0_i32_1 = arith.constant 0 : i32
    return %c0_i32, %c0_i32_0 : i32, i32
  }
  func.func @transform_8(%arg0: i32) -> (i32, i32) {
    %c0_i32 = arith.constant 0 : i32
    %c0_i32_0 = arith.constant 0 : i32
    %c0_i32_1 = arith.constant 0 : i32
    return %c0_i32, %c0_i32_0 : i32, i32
  }
  func.func @transform_9(%arg0: i32) -> (i32, i32) {
    %c0_i32 = arith.constant 0 : i32
    %c0_i32_0 = arith.constant 0 : i32
    %c0_i32_1 = arith.constant 0 : i32
    return %c0_i32, %c0_i32_0 : i32, i32
  }
  func.func @transform_10(%arg0: i32) -> (i32, i32) {
    %c0_i32 = arith.constant 0 : i32
    %c0_i32_0 = arith.constant 0 : i32
    %c0_i32_1 = arith.constant 0 : i32
    return %c0_i32, %c0_i32_0 : i32, i32
  }
  func.func @transform_11(%arg0: i32) -> (i32, i32) {
    %c0_i32 = arith.constant 0 : i32
    %c0_i32_0 = arith.constant 0 : i32
    %c0_i32_1 = arith.constant 0 : i32
    return %c0_i32, %c0_i32_0 : i32, i32
  }
  func.func @transform_12(%arg0: i32) -> (i32, i32) {
    %c0_i32 = arith.constant 0 : i32
    %c0_i32_0 = arith.constant 0 : i32
    %c0_i32_1 = arith.constant 0 : i32
    return %c0_i32, %c0_i32_0 : i32, i32
  }
  func.func @transform_13(%arg0: i32) -> (i32, i32) {
    %c0_i32 = arith.constant 0 : i32
    %c0_i32_0 = arith.constant 0 : i32
    %c0_i32_1 = arith.constant 0 : i32
    return %c0_i32, %c0_i32_0 : i32, i32
  }
  func.func @transform_14(%arg0: i32) -> (i32, i32) {
    %c0_i32 = arith.constant 0 : i32
    %c0_i32_0 = arith.constant 0 : i32
    %c0_i32_1 = arith.constant 0 : i32
    return %c0_i32, %c0_i32_0 : i32, i32
  }
  func.func @transform_15(%arg0: i32) -> (i32, i32, i32) {
    %c0_i32 = arith.constant 0 : i32
    %c0_i32_0 = arith.constant 0 : i32
    %c0_i32_1 = arith.constant 0 : i32
    return %arg0, %c0_i32, %c0_i32_0 : i32, i32, i32
  }
  func.func @transform_16(%arg0: i32) -> (i32, i32, i32) {
    %c0_i32 = arith.constant 0 : i32
    %c0_i32_0 = arith.constant 0 : i32
    %c0_i32_1 = arith.constant 0 : i32
    return %arg0, %c0_i32, %c0_i32_0 : i32, i32, i32
  }
}

</mosaic_0001>

<llo_original>
// kernel: tpu_custom_call.1
$region0: #{tpu_custom_call.1}
  #allocation0 [shape = 'u32[]', space=smem, size = 0x4, offset = 0x4, fixed_abs, tag = 'smem constant byte address 0x4 - core index']
  #allocation1 [shape = 'u32[72,128]{1,0:T(1,128)}', space=vmem, size = 0x9000, scoped, tag = 'internal scratch']
  #allocation2 [shape = 'f32[24,32]{1,0:T(8,128)}', space=vmem, size = 0x3000, scoped, tag = 'scratch operand']
  %s0 = inlined_call_operand.vmem [shape: f32[2,16,32], index: 0, kind: input, shape index: {}]
  %s1 = inlined_call_operand.vmem [shape: f32[2,16,16], index: 1, kind: input, shape index: {}]
  %s2 = inlined_call_operand.vmem [shape: f32[2,16,1], index: 2, kind: input, shape index: {}]
  %s3 = inlined_call_operand.vmem [shape: f32[32,96], index: 3, kind: input, shape index: {}]
  %s4 = inlined_call_operand.vmem [shape: f32[1,96], index: 4, kind: input, shape index: {}]
  %s5 = inlined_call_operand.vmem [shape: f32[32,32], index: 5, kind: input, shape index: {}]
  %s6 = inlined_call_operand.vmem [shape: f32[1,32], index: 6, kind: input, shape index: {}]
  %s7 = inlined_call_operand.vmem [shape: f32[1,32], index: 7, kind: input, shape index: {}]
  %s8 = inlined_call_operand.vmem [shape: f32[1,32], index: 8, kind: input, shape index: {}]
  %s9 = inlined_call_operand.vmem [shape: f32[288,64], index: 9, kind: input, shape index: {}]
  %s10 = inlined_call_operand.vmem [shape: f32[1,64], index: 10, kind: input, shape index: {}]
  %s11 = inlined_call_operand.vmem [shape: f32[64,32], index: 11, kind: input, shape index: {}]
  %s12 = inlined_call_operand.vmem [shape: f32[1,32], index: 12, kind: input, shape index: {}]
  %s13 = inlined_call_operand.vmem [shape: f32[1,32], index: 13, kind: input, shape index: {}]
  %s14 = inlined_call_operand.vmem [shape: f32[1,32], index: 14, kind: input, shape index: {}]
  %s15 = inlined_call_operand.hbm [shape: f32[2,16,32], index: 15, kind: output, shape index: {0}]
  %s16 = inlined_call_operand.hbm [shape: f32[2,16,32], index: 16, kind: output, shape index: {1}]
  %17 = xla_tuple %s15, %s16
  %s18 = sld [smem:[#allocation0]]
  $region101: #{tpu_custom_call.1} parent=0
    _
  %s20 = ssub.s32 1, %s18
  %s21 = scalar_select 0, %s20, %s18
  $region1: #{tpu_custom_call.1} parent=0
    #allocation3 [shape = 'u8[16384]{0}', space=vmem, size = 0x4000, scoped, tag = 'output window, operand 0']
    #allocation4 [shape = 's32[2]{0}', space=sflag, size = 0x8, scoped, tag = 'scoped memory for tpu_custom_call.1']
    #allocation5 [shape = 'u8[16384]{0}', space=vmem, size = 0x4000, scoped, tag = 'output window, operand 1']
    #allocation6 [shape = 's32[2]{0}', space=sflag, size = 0x8, scoped, tag = 'scoped memory for tpu_custom_call.1']
    %22 = vsyncpa [#allocation4], 0
    %s23 = scalar_lea.sflag [#allocation4], 1
    %24 = vsyncpa %s23, 0
    %25 = vsyncpa [#allocation6], 0
    %s26 = scalar_lea.sflag [#allocation6], 1
    %27 = vsyncpa %s26, 0
    loop: start=0, step=1, limit=4
    $region2: #{tpu_custom_call.1} parent=1 // loop_pre_header
      _
    $region3: #{tpu_custom_call.1} parent=1 // loop_header
      %s29 = sphi 0, %s33
      %p30 = scmp.ge.s32.totalorder %s29, 4
      %s39 = sphi 0, %s41
      %s42 = sphi 0, %s39
      %s43 = sphi 0, %s42
      %s59 = sphi 0, %s43
      %s65 = sphi 0, %s67
      %s68 = sphi 0, %s65
      %s69 = sphi 0, %s68
      %s85 = sphi 0, %s69
      %s91 = sphi 0, %s93
      %s94 = sphi 0, %s91
      %s95 = sphi 0, %s94
      %s111 = sphi 0, %s95
      %s115 = sphi 0, %s115
      %s117 = sphi 0, %s115
      %s118 = sphi 0, %s117
      %s132 = sphi 0, %s118
      %s136 = sphi 0, %s136
      %s138 = sphi 0, %s136
      %s139 = sphi 0, %s138
      %s153 = sphi 0, %s139
      %s157 = sphi 0, %s157
      %s159 = sphi 0, %s157
      %s160 = sphi 0, %s159
      %s174 = sphi 0, %s160
      %s178 = sphi 0, %s178
      %s180 = sphi 0, %s178
      %s181 = sphi 0, %s180
      %s195 = sphi 0, %s181
      %s199 = sphi 0, %s199
      %s201 = sphi 0, %s199
      %s202 = sphi 0, %s201
      %s216 = sphi 0, %s202
      %s220 = sphi 0, %s220
      %s222 = sphi 0, %s220
      %s223 = sphi 0, %s222
      %s237 = sphi 0, %s223
      %s241 = sphi 0, %s241
      %s243 = sphi 0, %s241
      %s244 = sphi 0, %s243
      %s258 = sphi 0, %s244
      %s262 = sphi 0, %s262
      %s264 = sphi 0, %s262
      %s265 = sphi 0, %s264
      %s279 = sphi 0, %s265
      %s283 = sphi 0, %s283
      %s285 = sphi 0, %s283
      %s286 = sphi 0, %s285
      %s300 = sphi 0, %s286
      %s304 = sphi 0, %s304
      %s306 = sphi 0, %s304
      %s307 = sphi 0, %s306
      %s321 = sphi 0, %s307
      %s325 = sphi 0, %s325
      %s327 = sphi 0, %s325
      %s328 = sphi 0, %s327
      %s342 = sphi 0, %s328
      %s346 = sphi 0, %s346
      %s348 = sphi 0, %s346
      %s349 = sphi 0, %s348
      %s363 = sphi 0, %s349
      %s369 = sphi 0, %s371
      %s372 = sphi 0, %s369
      %s373 = sphi 0, %s372
      %s389 = sphi 0, %s373
      %s395 = sphi 0, %s397
      %s398 = sphi 0, %s395
      %s399 = sphi 0, %s398
      %s415 = sphi 0, %s399
    $region4: #{tpu_custom_call.1} parent=1 // loop_header_branch
      %32 = sbr.rel (%p30) target = $region8
    $region5: #{tpu_custom_call.1} parent=1 // loop_body
      %s34 = ssub.s32 %s29, 1
      %s35 = ssub.s32 %s29, 2
      %s36 = sadd.s32 %s29, 1
      %s37 = ssub.s32 %s29, %s36
      %p38 = scmp.eq.s32.totalorder %s37, 0
      %s40 = sadd.s32 %s39, 1
      %s41 = scalar_select %p38, %s39, %s40
      %p44 = pneg %p38
      %p45 = scmp.eq.s32.totalorder %s29, 1
      %p46 = por %p44, %p45
      %p47 = scmp.ne.s32.totalorder %s39, %s42
      %p48 = scmp.eq.s32.totalorder %s29, 0
      %p49 = por %p47, %p48
      %p50 = scmp.ne.s32.totalorder %s39, %s42
      %p51 = scmp.eq.s32.totalorder %s34, 1
      %p52 = por %p50, %p51
      %p53 = scmp.ne.s32.totalorder %s42, %s43
      %p54 = scmp.eq.s32.totalorder %s34, 0
      %p55 = por %p53, %p54
      %p56 = scmp.ne.s32.totalorder %s42, %s43
      %p57 = scmp.eq.s32.totalorder %s35, 1
      %p58 = por %p56, %p57
      %p60 = scmp.ne.s32.totalorder %s43, %s59
      %p61 = scmp.eq.s32.totalorder %s35, 0
      %p62 = por %p60, %p61
      %s63 = ssub.s32 %s29, %s36
      %p64 = scmp.eq.s32.totalorder %s63, 0
      %s66 = sadd.s32 %s65, 1
      %s67 = scalar_select %p64, %s65, %s66
      %p70 = pneg %p64
      %p71 = scmp.eq.s32.totalorder %s29, 1
      %p72 = por %p70, %p71
      %p73 = scmp.ne.s32.totalorder %s65, %s68
      %p74 = scmp.eq.s32.totalorder %s29, 0
      %p75 = por %p73, %p74
      %p76 = scmp.ne.s32.totalorder %s65, %s68
      %p77 = scmp.eq.s32.totalorder %s34, 1
      %p78 = por %p76, %p77
      %p79 = scmp.ne.s32.totalorder %s68, %s69
      %p80 = scmp.eq.s32.totalorder %s34, 0
      %p81 = por %p79, %p80
      %p82 = scmp.ne.s32.totalorder %s68, %s69
      %p83 = scmp.eq.s32.totalorder %s35, 1
      %p84 = por %p82, %p83
      %p86 = scmp.ne.s32.totalorder %s69, %s85
      %p87 = scmp.eq.s32.totalorder %s35, 0
      %p88 = por %p86, %p87
      %s89 = ssub.s32 %s29, %s36
      %p90 = scmp.eq.s32.totalorder %s89, 0
      %s92 = sadd.s32 %s91, 1
      %s93 = scalar_select %p90, %s91, %s92
      %p96 = pneg %p90
      %p97 = scmp.eq.s32.totalorder %s29, 1
      %p98 = por %p96, %p97
      %p99 = scmp.ne.s32.totalorder %s91, %s94
      %p100 = scmp.eq.s32.totalorder %s29, 0
      %p101 = por %p99, %p100
      %p102 = scmp.ne.s32.totalorder %s91, %s94
      %p103 = scmp.eq.s32.totalorder %s34, 1
      %p104 = por %p102, %p103
      %p105 = scmp.ne.s32.totalorder %s94, %s95
      %p106 = scmp.eq.s32.totalorder %s34, 0
      %p107 = por %p105, %p106
      %p108 = scmp.ne.s32.totalorder %s94, %s95
      %p109 = scmp.eq.s32.totalorder %s35, 1
      %p110 = por %p108, %p109
      %p112 = scmp.ne.s32.totalorder %s95, %s111
      %p113 = scmp.eq.s32.totalorder %s35, 0
      %p114 = por %p112, %p113
      %s116 = sadd.s32 %s115, 1
      %p119 = scmp.eq.s32.totalorder %s29, 1
      %p120 = scmp.ne.s32.totalorder %s115, %s117
      %p121 = scmp.eq.s32.totalorder %s29, 0
      %p122 = por %p120, %p121
      %p123 = scmp.ne.s32.totalorder %s115, %s117
      %p124 = scmp.eq.s32.totalorder %s34, 1
      %p125 = por %p123, %p124
      %p126 = scmp.ne.s32.totalorder %s117, %s118
      %p127 = scmp.eq.s32.totalorder %s34, 0
      %p128 = por %p126, %p127
      %p129 = scmp.ne.s32.totalorder %s117, %s118
      %p130 = scmp.eq.s32.totalorder %s35, 1
      %p131 = por %p129, %p130
      %p133 = scmp.ne.s32.totalorder %s118, %s132
      %p134 = scmp.eq.s32.totalorder %s35, 0
      %p135 = por %p133, %p134
      %s137 = sadd.s32 %s136, 1
      %p140 = scmp.eq.s32.totalorder %s29, 1
      %p141 = scmp.ne.s32.totalorder %s136, %s138
      %p142 = scmp.eq.s32.totalorder %s29, 0
      %p143 = por %p141, %p142
      %p144 = scmp.ne.s32.totalorder %s136, %s138
      %p145 = scmp.eq.s32.totalorder %s34, 1
      %p146 = por %p144, %p145
      %p147 = scmp.ne.s32.totalorder %s138, %s139
      %p148 = scmp.eq.s32.totalorder %s34, 0
      %p149 = por %p147, %p148
      %p150 = scmp.ne.s32.totalorder %s138, %s139
      %p151 = scmp.eq.s32.totalorder %s35, 1
      %p152 = por %p150, %p151
      %p154 = scmp.ne.s32.totalorder %s139, %s153
      %p155 = scmp.eq.s32.totalorder %s35, 0
      %p156 = por %p154, %p155
      %s158 = sadd.s32 %s157, 1
      %p161 = scmp.eq.s32.totalorder %s29, 1
      %p162 = scmp.ne.s32.totalorder %s157, %s159
      %p163 = scmp.eq.s32.totalorder %s29, 0
      %p164 = por %p162, %p163
      %p165 = scmp.ne.s32.totalorder %s157, %s159
      %p166 = scmp.eq.s32.totalorder %s34, 1
      %p167 = por %p165, %p166
      %p168 = scmp.ne.s32.totalorder %s159, %s160
      %p169 = scmp.eq.s32.totalorder %s34, 0
      %p170 = por %p168, %p169
      %p171 = scmp.ne.s32.totalorder %s159, %s160
      %p172 = scmp.eq.s32.totalorder %s35, 1
      %p173 = por %p171, %p172
      %p175 = scmp.ne.s32.totalorder %s160, %s174
      %p176 = scmp.eq.s32.totalorder %s35, 0
      %p177 = por %p175, %p176
      %s179 = sadd.s32 %s178, 1
      %p182 = scmp.eq.s32.totalorder %s29, 1
      %p183 = scmp.ne.s32.totalorder %s178, %s180
      %p184 = scmp.eq.s32.totalorder %s29, 0
      %p185 = por %p183, %p184
      %p186 = scmp.ne.s32.totalorder %s178, %s180
      %p187 = scmp.eq.s32.totalorder %s34, 1
      %p188 = por %p186, %p187
      %p189 = scmp.ne.s32.totalorder %s180, %s181
      %p190 = scmp.eq.s32.totalorder %s34, 0
      %p191 = por %p189, %p190
      %p192 = scmp.ne.s32.totalorder %s180, %s181
      %p193 = scmp.eq.s32.totalorder %s35, 1
      %p194 = por %p192, %p193
      %p196 = scmp.ne.s32.totalorder %s181, %s195
      %p197 = scmp.eq.s32.totalorder %s35, 0
      %p198 = por %p196, %p197
      %s200 = sadd.s32 %s199, 1
      %p203 = scmp.eq.s32.totalorder %s29, 1
      %p204 = scmp.ne.s32.totalorder %s199, %s201
      %p205 = scmp.eq.s32.totalorder %s29, 0
      %p206 = por %p204, %p205
      %p207 = scmp.ne.s32.totalorder %s199, %s201
      %p208 = scmp.eq.s32.totalorder %s34, 1
      %p209 = por %p207, %p208
      %p210 = scmp.ne.s32.totalorder %s201, %s202
      %p211 = scmp.eq.s32.totalorder %s34, 0
      %p212 = por %p210, %p211
      %p213 = scmp.ne.s32.totalorder %s201, %s202
      %p214 = scmp.eq.s32.totalorder %s35, 1
      %p215 = por %p213, %p214
      %p217 = scmp.ne.s32.totalorder %s202, %s216
      %p218 = scmp.eq.s32.totalorder %s35, 0
      %p219 = por %p217, %p218
      %s221 = sadd.s32 %s220, 1
      %p224 = scmp.eq.s32.totalorder %s29, 1
      %p225 = scmp.ne.s32.totalorder %s220, %s222
      %p226 = scmp.eq.s32.totalorder %s29, 0
      %p227 = por %p225, %p226
      %p228 = scmp.ne.s32.totalorder %s220, %s222
      %p229 = scmp.eq.s32.totalorder %s34, 1
      %p230 = por %p228, %p229
      %p231 = scmp.ne.s32.totalorder %s222, %s223
      %p232 = scmp.eq.s32.totalorder %s34, 0
      %p233 = por %p231, %p232
      %p234 = scmp.ne.s32.totalorder %s222, %s223
      %p235 = scmp.eq.s32.totalorder %s35, 1
      %p236 = por %p234, %p235
      %p238 = scmp.ne.s32.totalorder %s223, %s237
      %p239 = scmp.eq.s32.totalorder %s35, 0
      %p240 = por %p238, %p239
      %s242 = sadd.s32 %s241, 1
      %p245 = scmp.eq.s32.totalorder %s29, 1
      %p246 = scmp.ne.s32.totalorder %s241, %s243
      %p247 = scmp.eq.s32.totalorder %s29, 0
      %p248 = por %p246, %p247
      %p249 = scmp.ne.s32.totalorder %s241, %s243
      %p250 = scmp.eq.s32.totalorder %s34, 1
      %p251 = por %p249, %p250
      %p252 = scmp.ne.s32.totalorder %s243, %s244
      %p253 = scmp.eq.s32.totalorder %s34, 0
      %p254 = por %p252, %p253
      %p255 = scmp.ne.s32.totalorder %s243, %s244
      %p256 = scmp.eq.s32.totalorder %s35, 1
      %p257 = por %p255, %p256
      %p259 = scmp.ne.s32.totalorder %s244, %s258
      %p260 = scmp.eq.s32.totalorder %s35, 0
      %p261 = por %p259, %p260
      %s263 = sadd.s32 %s262, 1
      %p266 = scmp.eq.s32.totalorder %s29, 1
      %p267 = scmp.ne.s32.totalorder %s262, %s264
      %p268 = scmp.eq.s32.totalorder %s29, 0
      %p269 = por %p267, %p268
      %p270 = scmp.ne.s32.totalorder %s262, %s264
      %p271 = scmp.eq.s32.totalorder %s34, 1
      %p272 = por %p270, %p271
      %p273 = scmp.ne.s32.totalorder %s264, %s265
      %p274 = scmp.eq.s32.totalorder %s34, 0
      %p275 = por %p273, %p274
      %p276 = scmp.ne.s32.totalorder %s264, %s265
      %p277 = scmp.eq.s32.totalorder %s35, 1
      %p278 = por %p276, %p277
      %p280 = scmp.ne.s32.totalorder %s265, %s279
      %p281 = scmp.eq.s32.totalorder %s35, 0
      %p282 = por %p280, %p281
      %s284 = sadd.s32 %s283, 1
      %p287 = scmp.eq.s32.totalorder %s29, 1
      %p288 = scmp.ne.s32.totalorder %s283, %s285
      %p289 = scmp.eq.s32.totalorder %s29, 0
      %p290 = por %p288, %p289
      %p291 = scmp.ne.s32.totalorder %s283, %s285
      %p292 = scmp.eq.s32.totalorder %s34, 1
      %p293 = por %p291, %p292
      %p294 = scmp.ne.s32.totalorder %s285, %s286
      %p295 = scmp.eq.s32.totalorder %s34, 0
      %p296 = por %p294, %p295
      %p297 = scmp.ne.s32.totalorder %s285, %s286
      %p298 = scmp.eq.s32.totalorder %s35, 1
      %p299 = por %p297, %p298
      %p301 = scmp.ne.s32.totalorder %s286, %s300
      %p302 = scmp.eq.s32.totalorder %s35, 0
      %p303 = por %p301, %p302
      %s305 = sadd.s32 %s304, 1
      %p308 = scmp.eq.s32.totalorder %s29, 1
      %p309 = scmp.ne.s32.totalorder %s304, %s306
      %p310 = scmp.eq.s32.totalorder %s29, 0
      %p311 = por %p309, %p310
      %p312 = scmp.ne.s32.totalorder %s304, %s306
      %p313 = scmp.eq.s32.totalorder %s34, 1
      %p314 = por %p312, %p313
      %p315 = scmp.ne.s32.totalorder %s306, %s307
      %p316 = scmp.eq.s32.totalorder %s34, 0
      %p317 = por %p315, %p316
      %p318 = scmp.ne.s32.totalorder %s306, %s307
      %p319 = scmp.eq.s32.totalorder %s35, 1
      %p320 = por %p318, %p319
      %p322 = scmp.ne.s32.totalorder %s307, %s321
      %p323 = scmp.eq.s32.totalorder %s35, 0
      %p324 = por %p322, %p323
      %s326 = sadd.s32 %s325, 1
      %p329 = scmp.eq.s32.totalorder %s29, 1
      %p330 = scmp.ne.s32.totalorder %s325, %s327
      %p331 = scmp.eq.s32.totalorder %s29, 0
      %p332 = por %p330, %p331
      %p333 = scmp.ne.s32.totalorder %s325, %s327
      %p334 = scmp.eq.s32.totalorder %s34, 1
      %p335 = por %p333, %p334
      %p336 = scmp.ne.s32.totalorder %s327, %s328
      %p337 = scmp.eq.s32.totalorder %s34, 0
      %p338 = por %p336, %p337
      %p339 = scmp.ne.s32.totalorder %s327, %s328
      %p340 = scmp.eq.s32.totalorder %s35, 1
      %p341 = por %p339, %p340
      %p343 = scmp.ne.s32.totalorder %s328, %s342
      %p344 = scmp.eq.s32.totalorder %s35, 0
      %p345 = por %p343, %p344
      %s347 = sadd.s32 %s346, 1
      %p350 = scmp.eq.s32.totalorder %s29, 1
      %p351 = scmp.ne.s32.totalorder %s346, %s348
      %p352 = scmp.eq.s32.totalorder %s29, 0
      %p353 = por %p351, %p352
      %p354 = scmp.ne.s32.totalorder %s346, %s348
      %p355 = scmp.eq.s32.totalorder %s34, 1
      %p356 = por %p354, %p355
      %p357 = scmp.ne.s32.totalorder %s348, %s349
      %p358 = scmp.eq.s32.totalorder %s34, 0
      %p359 = por %p357, %p358
      %p360 = scmp.ne.s32.totalorder %s348, %s349
      %p361 = scmp.eq.s32.totalorder %s35, 1
      %p362 = por %p360, %p361
      %p364 = scmp.ne.s32.totalorder %s349, %s363
      %p365 = scmp.eq.s32.totalorder %s35, 0
      %p366 = por %p364, %p365
      %s367 = ssub.s32 %s29, %s36
      %p368 = scmp.eq.s32.totalorder %s367, 0
      %s370 = sadd.s32 %s369, 1
      %s371 = scalar_select %p368, %s369, %s370
      %p374 = pneg %p368
      %p375 = scmp.eq.s32.totalorder %s29, 1
      %p376 = por %p374, %p375
      %p377 = scmp.ne.s32.totalorder %s369, %s372
      %p378 = scmp.eq.s32.totalorder %s29, 0
      %p379 = por %p377, %p378
      %p380 = scmp.ne.s32.totalorder %s369, %s372
      %p381 = scmp.eq.s32.totalorder %s34, 1
      %p382 = por %p380, %p381
      %p383 = scmp.ne.s32.totalorder %s372, %s373
      %p384 = scmp.eq.s32.totalorder %s34, 0
      %p385 = por %p383, %p384
      %p386 = scmp.ne.s32.totalorder %s372, %s373
      %p387 = scmp.eq.s32.totalorder %s35, 1
      %p388 = por %p386, %p387
      %p390 = scmp.ne.s32.totalorder %s373, %s389
      %p391 = scmp.eq.s32.totalorder %s35, 0
      %p392 = por %p390, %p391
      %s393 = ssub.s32 %s29, %s36
      %p394 = scmp.eq.s32.totalorder %s393, 0
      %s396 = sadd.s32 %s395, 1
      %s397 = scalar_select %p394, %s395, %s396
      %p400 = pneg %p394
      %p401 = scmp.eq.s32.totalorder %s29, 1
      %p402 = por %p400, %p401
      %p403 = scmp.ne.s32.totalorder %s395, %s398
      %p404 = scmp.eq.s32.totalorder %s29, 0
      %p405 = por %p403, %p404
      %p406 = scmp.ne.s32.totalorder %s395, %s398
      %p407 = scmp.eq.s32.totalorder %s34, 1
      %p408 = por %p406, %p407
      %p409 = scmp.ne.s32.totalorder %s398, %s399
      %p410 = scmp.eq.s32.totalorder %s34, 0
      %p411 = por %p409, %p410
      %p412 = scmp.ne.s32.totalorder %s398, %s399
      %p413 = scmp.eq.s32.totalorder %s35, 1
      %p414 = por %p412, %p413
      %p416 = scmp.ne.s32.totalorder %s399, %s415
      %p417 = scmp.eq.s32.totalorder %s35, 0
      %p418 = por %p416, %p417
      %p419 = scmp.le.s32.totalorder 1, %s29
      %p420 = scmp.lt.s32.totalorder %s29, 3
      %p421 = pnand %p419, %p420
      %p422 = pneg %p421
      // Predicated region
      $region9: #{tpu_custom_call.1} parent=5 // pred_check
        _
      $region10: #{tpu_custom_call.1} parent=5 // pred_check_branch
        %424 = sbr.rel (%p421) target = $region12
      $region11: #{tpu_custom_call.1} parent=5 // pred_region
        %s425 = ssub.s32 %s29, 1
        // Predicated region
        $region13: #{tpu_custom_call.1} parent=11 // pred_check
          %p426 = pneg %p128
        $region14: #{tpu_custom_call.1} parent=11 // pred_check_branch
          %428 = sbr.rel (%p426) target = $region16
        $region15: #{tpu_custom_call.1} parent=11 // pred_region
          _
        $region16: #{tpu_custom_call.1} parent=11 // pred_fallthru
          _
        // Predicated region
        $region17: #{tpu_custom_call.1} parent=11 // pred_check
          %p429 = pneg %p149
        $region18: #{tpu_custom_call.1} parent=11 // pred_check_branch
          %431 = sbr.rel (%p429) target = $region20
        $region19: #{tpu_custom_call.1} parent=11 // pred_region
          _
        $region20: #{tpu_custom_call.1} parent=11 // pred_fallthru
          _
        // Predicated region
        $region21: #{tpu_custom_call.1} parent=11 // pred_check
          %p432 = pneg %p170
        $region22: #{tpu_custom_call.1} parent=11 // pred_check_branch
          %434 = sbr.rel (%p432) target = $region24
        $region23: #{tpu_custom_call.1} parent=11 // pred_region
          _
        $region24: #{tpu_custom_call.1} parent=11 // pred_fallthru
          _
        // Predicated region
        $region25: #{tpu_custom_call.1} parent=11 // pred_check
          %p435 = pneg %p191
        $region26: #{tpu_custom_call.1} parent=11 // pred_check_branch
          %437 = sbr.rel (%p435) target = $region28
        $region27: #{tpu_custom_call.1} parent=11 // pred_region
          _
        $region28: #{tpu_custom_call.1} parent=11 // pred_fallthru
          _
        // Predicated region
        $region29: #{tpu_custom_call.1} parent=11 // pred_check
          %p438 = pneg %p212
        $region30: #{tpu_custom_call.1} parent=11 // pred_check_branch
          %440 = sbr.rel (%p438) target = $region32
        $region31: #{tpu_custom_call.1} parent=11 // pred_region
          _
        $region32: #{tpu_custom_call.1} parent=11 // pred_fallthru
          _
        // Predicated region
        $region33: #{tpu_custom_call.1} parent=11 // pred_check
          %p441 = pneg %p233
        $region34: #{tpu_custom_call.1} parent=11 // pred_check_branch
          %443 = sbr.rel (%p441) target = $region36
        $region35: #{tpu_custom_call.1} parent=11 // pred_region
          _
        $region36: #{tpu_custom_call.1} parent=11 // pred_fallthru
          _
        // Predicated region
        $region37: #{tpu_custom_call.1} parent=11 // pred_check
          %p444 = pneg %p254
        $region38: #{tpu_custom_call.1} parent=11 // pred_check_branch
          %446 = sbr.rel (%p444) target = $region40
        $region39: #{tpu_custom_call.1} parent=11 // pred_region
          _
        $region40: #{tpu_custom_call.1} parent=11 // pred_fallthru
          _
        // Predicated region
        $region41: #{tpu_custom_call.1} parent=11 // pred_check
          %p447 = pneg %p275
        $region42: #{tpu_custom_call.1} parent=11 // pred_check_branch
          %449 = sbr.rel (%p447) target = $region44
        $region43: #{tpu_custom_call.1} parent=11 // pred_region
          _
        $region44: #{tpu_custom_call.1} parent=11 // pred_fallthru
          _
        // Predicated region
        $region45: #{tpu_custom_call.1} parent=11 // pred_check
          %p450 = pneg %p296
        $region46: #{tpu_custom_call.1} parent=11 // pred_check_branch
          %452 = sbr.rel (%p450) target = $region48
        $region47: #{tpu_custom_call.1} parent=11 // pred_region
          _
        $region48: #{tpu_custom_call.1} parent=11 // pred_fallthru
          _
        // Predicated region
        $region49: #{tpu_custom_call.1} parent=11 // pred_check
          %p453 = pneg %p317
        $region50: #{tpu_custom_call.1} parent=11 // pred_check_branch
          %455 = sbr.rel (%p453) target = $region52
        $region51: #{tpu_custom_call.1} parent=11 // pred_region
          _
        $region52: #{tpu_custom_call.1} parent=11 // pred_fallthru
          _
        // Predicated region
        $region53: #{tpu_custom_call.1} parent=11 // pred_check
          %p456 = pneg %p338
        $region54: #{tpu_custom_call.1} parent=11 // pred_check_branch
          %458 = sbr.rel (%p456) target = $region56
        $region55: #{tpu_custom_call.1} parent=11 // pred_region
          _
        $region56: #{tpu_custom_call.1} parent=11 // pred_fallthru
          _
        // Predicated region
        $region57: #{tpu_custom_call.1} parent=11 // pred_check
          %p459 = pneg %p359
        $region58: #{tpu_custom_call.1} parent=11 // pred_check_branch
          %461 = sbr.rel (%p459) target = $region60
        $region59: #{tpu_custom_call.1} parent=11 // pred_region
          _
        $region60: #{tpu_custom_call.1} parent=11 // pred_fallthru
          _
      $region12: #{tpu_custom_call.1} parent=5 // pred_fallthru
        _
      %p462 = scmp.lt.s32.totalorder %s29, 2
      // Predicated region
      $region61: #{tpu_custom_call.1} parent=5 // pred_check
        %p463 = pneg %p462
      $region62: #{tpu_custom_call.1} parent=5 // pred_check_branch
        %465 = sbr.rel (%p463) target = $region64
      $region63: #{tpu_custom_call.1} parent=5 // pred_region
        // Predicated region
        $region65: #{tpu_custom_call.1} parent=63 // pred_check
          %p466 = pneg %p49
        $region66: #{tpu_custom_call.1} parent=63 // pred_check_branch
          %468 = sbr.rel (%p466) target = $region68
        $region67: #{tpu_custom_call.1} parent=63 // pred_region
          %p469 = scmp.lt.s32.totalorder %s29, 1
          %s470 = scalar_select %p469, %s29, 1
          %s471 = smul.addr %s470, 2
          %s472 = smul.addr %s471, 8
          %s473 = scalar_lea.vmem %s0, %s472
        $region68: #{tpu_custom_call.1} parent=63 // pred_fallthru
          _
        // Predicated region
        $region69: #{tpu_custom_call.1} parent=63 // pred_check
          %p474 = pneg %p75
        $region70: #{tpu_custom_call.1} parent=63 // pred_check_branch
          %476 = sbr.rel (%p474) target = $region72
        $region71: #{tpu_custom_call.1} parent=63 // pred_region
          %p477 = scmp.lt.s32.totalorder %s29, 1
          %s478 = scalar_select %p477, %s29, 1
          %s479 = smul.addr %s478, 2
          %s480 = smul.addr %s479, 8
          %s481 = scalar_lea.vmem %s1, %s480
        $region72: #{tpu_custom_call.1} parent=63 // pred_fallthru
          _
        // Predicated region
        $region73: #{tpu_custom_call.1} parent=63 // pred_check
          %p482 = pneg %p101
        $region74: #{tpu_custom_call.1} parent=63 // pred_check_branch
          %484 = sbr.rel (%p482) target = $region76
        $region75: #{tpu_custom_call.1} parent=63 // pred_region
          %p485 = scmp.lt.s32.totalorder %s29, 1
          %s486 = scalar_select %p485, %s29, 1
          %s487 = smul.addr %s486, 2
          %s488 = smul.addr %s487, 8
          %s489 = scalar_lea.vmem %s2, %s488
        $region76: #{tpu_custom_call.1} parent=63 // pred_fallthru
          _
      $region64: #{tpu_custom_call.1} parent=5 // pred_fallthru
        _
      %p490 = scmp.le.s32.totalorder 1, %s29
      %p491 = scmp.lt.s32.totalorder %s29, 3
      %p492 = pnand %p490, %p491
      %p493 = pneg %p492
      // Predicated region
      $region77: #{tpu_custom_call.1} parent=5 // pred_check
        _
      $region78: #{tpu_custom_call.1} parent=5 // pred_check_branch
        %495 = sbr.rel (%p492) target = $region80
      $region79: #{tpu_custom_call.1} parent=5 // pred_region
        %s496 = ssub.s32 %s29, 1
        %p497 = scmp.lt.s32.totalorder %s34, 1
        %s498 = scalar_select %p497, %s34, 1
        %s499 = smul.addr %s498, 2
        %s500 = smul.addr %s499, 8
        %s501 = scalar_lea.vmem %s0, %s500
        %p502 = pneg %p55
        %p503 = pneg %p52
        %p504 = scmp.lt.s32.totalorder %s34, 1
        %s505 = scalar_select %p504, %s34, 1
        %s506 = smul.addr %s505, 2
        %s507 = smul.addr %s506, 8
        %s508 = scalar_lea.vmem %s1, %s507
        %p509 = pneg %p81
        %p510 = pneg %p78
        %p511 = scmp.lt.s32.totalorder %s34, 1
        %s512 = scalar_select %p511, %s34, 1
        %s513 = smul.addr %s512, 2
        %s514 = smul.addr %s513, 8
        %s515 = scalar_lea.vmem %s2, %s514
        %p516 = pneg %p107
        %p517 = pneg %p104
        %p518 = pneg %p128
        %p519 = pneg %p125
        %p520 = pneg %p149
        %p521 = pneg %p146
        %p522 = pneg %p170
        %p523 = pneg %p167
        %p524 = pneg %p191
        %p525 = pneg %p188
        %p526 = pneg %p212
        %p527 = pneg %p209
        %p528 = pneg %p233
        %p529 = pneg %p230
        %p530 = pneg %p254
        %p531 = pneg %p251
        %p532 = pneg %p275
        %p533 = pneg %p272
        %p534 = pneg %p296
        %p535 = pneg %p293
        %p536 = pneg %p317
        %p537 = pneg %p314
        %p538 = pneg %p338
        %p539 = pneg %p335
        %p540 = pneg %p359
        %p541 = pneg %p356
        %p542 = pneg %p385
        %p543 = pneg %p382
        %s544 = sand.u32 %s372, 1
        %s545 = scalar_lea.sflag [#allocation4], %s544
        %s546 = sand.u32 %s372, 1
        %s547 = smul.addr %s546, 16
        %s548 = scalar_lea.vmem [#allocation3], %s547
        %p549 = pneg %p411
        %p550 = pneg %p408
        %s551 = sand.u32 %s398, 1
        %s552 = scalar_lea.sflag [#allocation6], %s551
        %s553 = sand.u32 %s398, 1
        %s554 = smul.addr %s553, 16
        %s555 = scalar_lea.vmem [#allocation5], %s554
        %p556 = scmp.lt.s32.totalorder %s34, 1
        %s557 = scalar_select %p556, %s34, 1
        %s558 = smul.addr %s557, 2
        %s559 = smul.addr %s558, 8
        %s560 = scalar_lea.vmem %s0, %s559
        %p561 = scmp.lt.s32.totalorder %s34, 1
        %s562 = scalar_select %p561, %s34, 1
        %s563 = smul.addr %s562, 2
        %s564 = smul.addr %s563, 8
        %s565 = scalar_lea.vmem %s1, %s564
        %p566 = scmp.lt.s32.totalorder %s34, 1
        %s567 = scalar_select %p566, %s34, 1
        %s568 = smul.addr %s567, 2
        %s569 = smul.addr %s568, 8
        %s570 = scalar_lea.vmem %s2, %s569
        %v571 = vld [vmem:[%s3] sm:$0xff]
        %v572 = vld [vmem:[%s3 + $0x8] sm:$0xff]
        %v573 = vld [vmem:[%s3 + $0x10] sm:$0xff]
        %v574 = vld [vmem:[%s3 + $0x18] sm:$0xff]
        %v575 = vld [vmem:[%s4] sm:$0x1]
        %v576 = vld [vmem:[%s5] sm:$0xff]
        %v577 = vld [vmem:[%s5 + $0x8] sm:$0xff]
        %v578 = vld [vmem:[%s5 + $0x10] sm:$0xff]
        %v579 = vld [vmem:[%s5 + $0x18] sm:$0xff]
        %v580 = vld [vmem:[%s6] sm:$0x1]
        %v581 = vld [vmem:[%s7] sm:$0x1]
        %v582 = vld [vmem:[%s8] sm:$0x1]
        %v583 = vld [vmem:[%s9] sm:$0xff]
        %v584 = vld [vmem:[%s9 + $0x8] sm:$0xff]
        %v585 = vld [vmem:[%s9 + $0x10] sm:$0xff]
        %v586 = vld [vmem:[%s9 + $0x18] sm:$0xff]
        %v587 = vld [vmem:[%s9 + $0x20] sm:$0xff]
        %v588 = vld [vmem:[%s9 + $0x28] sm:$0xff]
        %v589 = vld [vmem:[%s9 + $0x30] sm:$0xff]
        %v590 = vld [vmem:[%s9 + $0x38] sm:$0xff]
        %v591 = vld [vmem:[%s9 + $0x40] sm:$0xff]
        %v592 = vld [vmem:[%s9 + $0x48] sm:$0xff]
        %v593 = vld [vmem:[%s9 + $0x50] sm:$0xff]
        %v594 = vld [vmem:[%s9 + $0x58] sm:$0xff]
        %v595 = vld [vmem:[%s9 + $0x60] sm:$0xff]
        %v596 = vld [vmem:[%s9 + $0x68] sm:$0xff]
        %v597 = vld [vmem:[%s9 + $0x70] sm:$0xff]
        %v598 = vld [vmem:[%s9 + $0x78] sm:$0xff]
        %v599 = vld [vmem:[%s9 + $0x80] sm:$0xff]
        %v600 = vld [vmem:[%s9 + $0x88] sm:$0xff]
        %v601 = vld [vmem:[%s9 + $0x90] sm:$0xff]
        %v602 = vld [vmem:[%s9 + $0x98] sm:$0xff]
        %v603 = vld [vmem:[%s9 + $0xa0] sm:$0xff]
        %v604 = vld [vmem:[%s9 + $0xa8] sm:$0xff]
        %v605 = vld [vmem:[%s9 + $0xb0] sm:$0xff]
        %v606 = vld [vmem:[%s9 + $0xb8] sm:$0xff]
        %v607 = vld [vmem:[%s9 + $0xc0] sm:$0xff]
        %v608 = vld [vmem:[%s9 + $0xc8] sm:$0xff]
        %v609 = vld [vmem:[%s9 + $0xd0] sm:$0xff]
        %v610 = vld [vmem:[%s9 + $0xd8] sm:$0xff]
        %v611 = vld [vmem:[%s9 + $0xe0] sm:$0xff]
        %v612 = vld [vmem:[%s9 + $0xe8] sm:$0xff]
        %v613 = vld [vmem:[%s9 + $0xf0] sm:$0xff]
        %v614 = vld [vmem:[%s9 + $0xf8] sm:$0xff]
        %v615 = vld [vmem:[%s9 + $0x100] sm:$0xff]
        %v616 = vld [vmem:[%s9 + $0x108] sm:$0xff]
        %v617 = vld [vmem:[%s9 + $0x110] sm:$0xff]
        %v618 = vld [vmem:[%s9 + $0x118] sm:$0xff]
        %v619 = vld [vmem:[%s10] sm:$0x1]
        %v620 = vld [vmem:[%s11] sm:$0xff]
        %v621 = vld [vmem:[%s11 + $0x8] sm:$0xff]
        %v622 = vld [vmem:[%s11 + $0x10] sm:$0xff]
        %v623 = vld [vmem:[%s11 + $0x18] sm:$0xff]
        %v624 = vld [vmem:[%s11 + $0x20] sm:$0xff]
        %v625 = vld [vmem:[%s11 + $0x28] sm:$0xff]
        %v626 = vld [vmem:[%s11 + $0x30] sm:$0xff]
        %v627 = vld [vmem:[%s11 + $0x38] sm:$0xff]
        %v628 = vld [vmem:[%s12] sm:$0x1]
        %v629 = vld [vmem:[%s13] sm:$0x1]
        %v630 = vld [vmem:[%s14] sm:$0x1]
        %vm631 = vcmask 257024
        %632 = vst.msk [vmem:[#allocation2] sm:$0xf] %vm631, 0.0
        %633 = vst.msk [vmem:[#allocation2 + $0x14] sm:$0xf] %vm631, 0.0
        %v634 = vld [vmem:[%s560] sm:$0xff]
        %v635 = vld [vmem:[%s560 + $0x8] sm:$0xff]
        %v636 = vld [vmem:[%s570] sm:$0xff]
        %v637 = vld [vmem:[%s570 + $0x8] sm:$0xff]
        %v638 = vld [vmem:[%s565] sm:$0xff]
        %v639 = vld [vmem:[%s565 + $0x8] sm:$0xff]
        %vm640 = vcmp.gt.f32.partialorder %v638, 0.5
        %vm641 = vcmp.gt.f32.partialorder %v639, 0.5
        %v642 = vsel %vm640, -inf, 0.0
        %v643 = vsel %vm641, -inf, 0.0
        %v645 = vperm.slane %v575, 0
        %vm647 = vcmask 261120
        %v649 = vsel %vm647, %v634, 0
        %v652 = vsel %vm647, %v635, 0
        %654 = vmatpush.msra.mxu0 0.0
        %655 = vmatpush.msra.mxu0 0.0
        %656 = vmatpush.msra.mxu0 0.0
        %657 = vmatpush.msra.mxu0 0.0
        %658 = vmatpush.msra.mxu0 0.0
        %659 = vmatpush.msra.mxu0 0.0
        %660 = vmatpush.msra.mxu0 0.0
        %661 = vmatpush.msra.mxu0 0.0
        %662 = vmatpush.msra.mxu0 0.0
        %663 = vmatpush.msra.mxu0 0.0
        %664 = vmatpush.msra.mxu0 0.0
        %665 = vmatpush.msra.mxu0 0.0
        %666 = vmatpush.msra.mxu0 %v574
        %667 = vmatpush.msra.mxu0 %v573
        %668 = vmatpush.msra.mxu0 %v572
        %669 = vmatpush.msra.mxu0 %v571
        %670 = vmatmul.f32.gmra.mxu0 %v649
        %v671 = vpop.f32.mrf.mxu0
        %v672 = vadd.f32 %v645, %v671
        %673 = vmatmul.f32.gmra.mxu0 %v652
        %v674 = vpop.f32.mrf.mxu0
        %v675 = vadd.f32 %v645, %v674
        %676 = vdwg.mxu0
        %v678 = vperm.slane %v580, 0
        %v680 = vadd.f32 %v634, %v678
        %v681 = vadd.f32 %v635, %v678
        %684 = vrot.lane.b32.xlu0 %v672, 96
        %v685 = vpop.permute.xlu0 %684
        %686 = vrot.lane.b32.xlu0 %v675, 96
        %v687 = vpop.permute.xlu0 %686
        %vm688 = vcmask 130048
        %v689 = vsel %vm688, %v672, 0
        %v691 = vsel %vm688, %v675, 0
        %v693 = vsel %vm688, %v685, 0
        %v695 = vsel %vm688, %v687, 0
        %697 = vmatpush.xpose.msra.mxu0 0.0
        %698 = vmatpush.xpose.msra.mxu0 0.0
        %699 = vmatpush.xpose.msra.mxu0 0.0
        %700 = vmatpush.xpose.msra.mxu0 0.0
        %701 = vmatpush.xpose.msra.mxu0 0.0
        %702 = vmatpush.xpose.msra.mxu0 0.0
        %703 = vmatpush.xpose.msra.mxu0 0.0
        %704 = vmatpush.xpose.msra.mxu0 0.0
        %705 = vmatpush.xpose.msra.mxu0 0.0
        %706 = vmatpush.xpose.msra.mxu0 0.0
        %707 = vmatpush.xpose.msra.mxu0 0.0
        %708 = vmatpush.xpose.msra.mxu0 0.0
        %709 = vmatpush.xpose.msra.mxu0 0.0
        %710 = vmatpush.xpose.msra.mxu0 0.0
        %711 = vmatpush.xpose.msra.mxu0 %v695
        %712 = vmatpush.xpose.msra.mxu0 %v693
        %713 = vmatmul.f32.gmra.mxu0 %v689
        %v714 = vpop.f32.mrf.mxu0
        %v715 = vadd.f32 %v642, %v714
        %716 = vmatmul.f32.gmra.mxu0 %v691
        %v717 = vpop.f32.mrf.mxu0
        %v718 = vadd.f32 %v643, %v717
        %719 = vdwg.mxu0
        %v720 = vsel %vm688, %v715, -inf
        %721 = vmax.xlane.f32.xlu0 %v720
        %v722 = vpop.xlane.xlu0 %721
        %v723 = vsel %vm688, %v718, -inf
        %724 = vmax.xlane.f32.xlu0 %v723
        %v725 = vpop.xlane.xlu0 %724
        %v726 = vsub.f32 %v715, %v722
        %v727 = vsub.f32 %v718, %v725
        %v728 = vmul.f32 %v726, 1.442695
        %v729 = vpow.pop %v728
        %v730 = vmul.f32 %v727, 1.442695
        %v731 = vpow.pop %v730
        %v732 = vsel %vm688, %v729, 0.0
        %733 = vadd.xlane.f32.xlu0 %v732
        %v734 = vpop.xlane.xlu0 %733
        %v735 = vsel %vm688, %v731, 0.0
        %736 = vadd.xlane.f32.xlu0 %v735
        %v737 = vpop.xlane.xlu0 %736
        %v738 = vrcp.pop %v734
        %v739 = vmul.f32 %v734, %v738
        %v740 = vsub.f32 1.0, %v739
        %v741 = vmul.f32 %v738, %v740
        %v742 = vadd.f32 %v738, %v741
        %vm743 = vweird.f32 %v734
        %vm744 = vweird.f32 %v738
        %vm745 = vmor %vm743, %vm744
        %v746 = vsel %vm745, %v738, %v742
        %v747 = vand.u32 2147483647, %v734
        %vm748 = vcmp.eq.f32.partialorder %v747, 8.507059e+37
        %v749 = vand.u32 %v734, 2147483648
        %v750 = vor.u32 1.1754944e-38, %v749
        %v751 = vsel %vm748, %v750, %v746
        %v752 = vmul.f32 %v729, %v751
        %v753 = vrcp.pop %v737
        %v754 = vmul.f32 %v737, %v753
        %v755 = vsub.f32 1.0, %v754
        %v756 = vmul.f32 %v753, %v755
        %v757 = vadd.f32 %v753, %v756
        %vm758 = vweird.f32 %v737
        %vm759 = vweird.f32 %v753
        %vm760 = vmor %vm758, %vm759
        %v761 = vsel %vm760, %v753, %v757
        %v762 = vand.u32 2147483647, %v737
        %vm763 = vcmp.eq.f32.partialorder %v762, 8.507059e+37
        %v764 = vand.u32 %v737, 2147483648
        %v765 = vor.u32 1.1754944e-38, %v764
        %v766 = vsel %vm763, %v765, %v761
        %v767 = vmul.f32 %v731, %v766
        %768 = vrot.lane.b32.xlu0 %v672, 64
        %v769 = vpop.permute.xlu0 %768
        %770 = vrot.lane.b32.xlu0 %v675, 64
        %v771 = vpop.permute.xlu0 %770
        %v775 = vsel %vm688, %v752, 0
        %v778 = vsel %vm688, %v767, 0
        %780 = vmatpush.msra.mxu0 0.0
        %781 = vmatpush.msra.mxu0 0.0
        %782 = vmatpush.msra.mxu0 0.0
        %783 = vmatpush.msra.mxu0 0.0
        %784 = vmatpush.msra.mxu0 0.0
        %785 = vmatpush.msra.mxu0 0.0
        %786 = vmatpush.msra.mxu0 0.0
        %787 = vmatpush.msra.mxu0 0.0
        %788 = vmatpush.msra.mxu0 0.0
        %789 = vmatpush.msra.mxu0 0.0
        %790 = vmatpush.msra.mxu0 0.0
        %791 = vmatpush.msra.mxu0 0.0
        %792 = vmatpush.msra.mxu0 0.0
        %793 = vmatpush.msra.mxu0 0.0
        %794 = vmatpush.msra.mxu0 %v771
        %795 = vmatpush.msra.mxu0 %v769
        %796 = vmatmul.f32.gmra.mxu0 %v775
        %v797 = vpop.f32.mrf.mxu0
        %v798 = vadd.f32 0.0, %v797
        %799 = vmatmul.f32.gmra.mxu0 %v778
        %v800 = vpop.f32.mrf.mxu0
        %v801 = vadd.f32 0.0, %v800
        %802 = vdwg.mxu0
        %v804 = vsel %vm688, %v798, 0
        %v807 = vsel %vm688, %v801, 0
        %809 = vmatpush.msra.mxu0 0.0
        %810 = vmatpush.msra.mxu0 0.0
        %811 = vmatpush.msra.mxu0 0.0
        %812 = vmatpush.msra.mxu0 0.0
        %813 = vmatpush.msra.mxu0 0.0
        %814 = vmatpush.msra.mxu0 0.0
        %815 = vmatpush.msra.mxu0 0.0
        %816 = vmatpush.msra.mxu0 0.0
        %817 = vmatpush.msra.mxu0 0.0
        %818 = vmatpush.msra.mxu0 0.0
        %819 = vmatpush.msra.mxu0 0.0
        %820 = vmatpush.msra.mxu0 0.0
        %821 = vmatpush.msra.mxu0 0.0
        %822 = vmatpush.msra.mxu0 0.0
        %823 = vmatpush.msra.mxu0 %v577
        %824 = vmatpush.msra.mxu0 %v576
        %825 = vmatmul.f32.gmra.mxu0 %v804
        %v826 = vpop.f32.mrf.mxu0
        %v827 = vadd.f32 0.0, %v826
        %828 = vmatmul.f32.gmra.mxu0 %v807
        %v829 = vpop.f32.mrf.mxu0
        %v830 = vadd.f32 0.0, %v829
        %831 = vdwg.mxu0
        %v832 = vadd.f32 %v680, %v827
        %v833 = vadd.f32 %v681, %v830
        %834 = vrot.lane.b32.xlu0 %v672, 112
        %v835 = vpop.permute.xlu0 %834
        %836 = vrot.lane.b32.xlu0 %v675, 112
        %v837 = vpop.permute.xlu0 %836
        %838 = vrot.lane.b32.xlu0 %v672, 80
        %v839 = vpop.permute.xlu0 %838
        %840 = vrot.lane.b32.xlu0 %v675, 80
        %v841 = vpop.permute.xlu0 %840
        %v842 = vsel %vm688, %v835, 0
        %v844 = vsel %vm688, %v837, 0
        %v846 = vsel %vm688, %v839, 0
        %v848 = vsel %vm688, %v841, 0
        %850 = vmatpush.xpose.msra.mxu0 0.0
        %851 = vmatpush.xpose.msra.mxu0 0.0
        %852 = vmatpush.xpose.msra.mxu0 0.0
        %853 = vmatpush.xpose.msra.mxu0 0.0
        %854 = vmatpush.xpose.msra.mxu0 0.0
        %855 = vmatpush.xpose.msra.mxu0 0.0
        %856 = vmatpush.xpose.msra.mxu0 0.0
        %857 = vmatpush.xpose.msra.mxu0 0.0
        %858 = vmatpush.xpose.msra.mxu0 0.0
        %859 = vmatpush.xpose.msra.mxu0 0.0
        %860 = vmatpush.xpose.msra.mxu0 0.0
        %861 = vmatpush.xpose.msra.mxu0 0.0
        %862 = vmatpush.xpose.msra.mxu0 0.0
        %863 = vmatpush.xpose.msra.mxu0 0.0
        %864 = vmatpush.xpose.msra.mxu0 %v848
        %865 = vmatpush.xpose.msra.mxu0 %v846
        %866 = vmatmul.f32.gmra.mxu0 %v842
        %v867 = vpop.f32.mrf.mxu0
        %v868 = vadd.f32 %v642, %v867
        %869 = vmatmul.f32.gmra.mxu0 %v844
        %v870 = vpop.f32.mrf.mxu0
        %v871 = vadd.f32 %v643, %v870
        %872 = vdwg.mxu0
        %v873 = vsel %vm688, %v868, -inf
        %874 = vmax.xlane.f32.xlu0 %v873
        %v875 = vpop.xlane.xlu0 %874
        %v876 = vsel %vm688, %v871, -inf
        %877 = vmax.xlane.f32.xlu0 %v876
        %v878 = vpop.xlane.xlu0 %877
        %v879 = vsub.f32 %v868, %v875
        %v880 = vsub.f32 %v871, %v878
        %v881 = vmul.f32 %v879, 1.442695
        %v882 = vpow.pop %v881
        %v883 = vmul.f32 %v880, 1.442695
        %v884 = vpow.pop %v883
        %v885 = vsel %vm688, %v882, 0.0
        %886 = vadd.xlane.f32.xlu0 %v885
        %v887 = vpop.xlane.xlu0 %886
        %v888 = vsel %vm688, %v884, 0.0
        %889 = vadd.xlane.f32.xlu0 %v888
        %v890 = vpop.xlane.xlu0 %889
        %v891 = vrcp.pop %v887
        %v892 = vmul.f32 %v887, %v891
        %v893 = vsub.f32 1.0, %v892
        %v894 = vmul.f32 %v891, %v893
        %v895 = vadd.f32 %v891, %v894
        %vm896 = vweird.f32 %v887
        %vm897 = vweird.f32 %v891
        %vm898 = vmor %vm896, %vm897
        %v899 = vsel %vm898, %v891, %v895
        %v900 = vand.u32 2147483647, %v887
        %vm901 = vcmp.eq.f32.partialorder %v900, 8.507059e+37
        %v902 = vand.u32 %v887, 2147483648
        %v903 = vor.u32 1.1754944e-38, %v902
        %v904 = vsel %vm901, %v903, %v899
        %v905 = vmul.f32 %v882, %v904
        %v906 = vrcp.pop %v890
        %v907 = vmul.f32 %v890, %v906
        %v908 = vsub.f32 1.0, %v907
        %v909 = vmul.f32 %v906, %v908
        %v910 = vadd.f32 %v906, %v909
        %vm911 = vweird.f32 %v890
        %vm912 = vweird.f32 %v906
        %vm913 = vmor %vm911, %vm912
        %v914 = vsel %vm913, %v906, %v910
        %v915 = vand.u32 2147483647, %v890
        %vm916 = vcmp.eq.f32.partialorder %v915, 8.507059e+37
        %v917 = vand.u32 %v890, 2147483648
        %v918 = vor.u32 1.1754944e-38, %v917
        %v919 = vsel %vm916, %v918, %v914
        %v920 = vmul.f32 %v884, %v919
        %921 = vrot.lane.b32.xlu0 %v672, 48
        %v922 = vpop.permute.xlu0 %921
        %923 = vrot.lane.b32.xlu0 %v675, 48
        %v924 = vpop.permute.xlu0 %923
        %v928 = vsel %vm688, %v905, 0
        %v931 = vsel %vm688, %v920, 0
        %933 = vmatpush.msra.mxu0 0.0
        %934 = vmatpush.msra.mxu0 0.0
        %935 = vmatpush.msra.mxu0 0.0
        %936 = vmatpush.msra.mxu0 0.0
        %937 = vmatpush.msra.mxu0 0.0
        %938 = vmatpush.msra.mxu0 0.0
        %939 = vmatpush.msra.mxu0 0.0
        %940 = vmatpush.msra.mxu0 0.0
        %941 = vmatpush.msra.mxu0 0.0
        %942 = vmatpush.msra.mxu0 0.0
        %943 = vmatpush.msra.mxu0 0.0
        %944 = vmatpush.msra.mxu0 0.0
        %945 = vmatpush.msra.mxu0 0.0
        %946 = vmatpush.msra.mxu0 0.0
        %947 = vmatpush.msra.mxu0 %v924
        %948 = vmatpush.msra.mxu0 %v922
        %949 = vmatmul.f32.gmra.mxu0 %v928
        %v950 = vpop.f32.mrf.mxu0
        %v951 = vadd.f32 0.0, %v950
        %952 = vmatmul.f32.gmra.mxu0 %v931
        %v953 = vpop.f32.mrf.mxu0
        %v954 = vadd.f32 0.0, %v953
        %955 = vdwg.mxu0
        %v957 = vsel %vm688, %v951, 0
        %v960 = vsel %vm688, %v954, 0
        %962 = vmatpush.msra.mxu0 0.0
        %963 = vmatpush.msra.mxu0 0.0
        %964 = vmatpush.msra.mxu0 0.0
        %965 = vmatpush.msra.mxu0 0.0
        %966 = vmatpush.msra.mxu0 0.0
        %967 = vmatpush.msra.mxu0 0.0
        %968 = vmatpush.msra.mxu0 0.0
        %969 = vmatpush.msra.mxu0 0.0
        %970 = vmatpush.msra.mxu0 0.0
        %971 = vmatpush.msra.mxu0 0.0
        %972 = vmatpush.msra.mxu0 0.0
        %973 = vmatpush.msra.mxu0 0.0
        %974 = vmatpush.msra.mxu0 0.0
        %975 = vmatpush.msra.mxu0 0.0
        %976 = vmatpush.msra.mxu0 %v579
        %977 = vmatpush.msra.mxu0 %v578
        %978 = vmatmul.f32.gmra.mxu0 %v957
        %v979 = vpop.f32.mrf.mxu0
        %v980 = vadd.f32 0.0, %v979
        %981 = vmatmul.f32.gmra.mxu0 %v960
        %v982 = vpop.f32.mrf.mxu0
        %v983 = vadd.f32 0.0, %v982
        %984 = vdwg.mxu0
        %v985 = vadd.f32 %v832, %v980
        %v986 = vadd.f32 %v833, %v983
        %987 = vrot.lane.b32.xlu0 %v905, 16
        %v988 = vpop.permute.xlu0 %987
        %989 = vrot.lane.b32.xlu0 %v920, 16
        %v990 = vpop.permute.xlu0 %989
        %v993 = vsel %vm688, %v752, %v988
        %v994 = vsel %vm688, %v767, %v990
        %995 = vst.msk [vmem:[%s555] sm:$0xff] %vm647, %v993
        %996 = vst.msk [vmem:[%s555 + $0x8] sm:$0xff] %vm647, %v994
        %v997 = vsel %vm647, %v985, 0.0
        %998 = vadd.xlane.f32.xlu0 %v997
        %v999 = vpop.xlane.xlu0 %998
        %v1000 = vsel %vm647, %v986, 0.0
        %1001 = vadd.xlane.f32.xlu0 %v1000
        %v1002 = vpop.xlane.xlu0 %1001
        %v1003 = vrcp.pop 32.0
        %v1004 = vmul.f32 32.0, %v1003
        %v1005 = vsub.f32 1.0, %v1004
        %v1006 = vmul.f32 %v1003, %v1005
        %v1007 = vadd.f32 %v1003, %v1006
        %vm1008 = vweird.f32 %v1003
        %v1009 = vsel %vm1008, %v1003, %v1007
        %v1010 = vmul.f32 %v999, %v1009
        %v1011 = vmul.f32 %v1002, %v1009
        %v1012 = vsub.f32 %v985, %v1010
        %v1013 = vsub.f32 %v986, %v1011
        %v1014 = vmul.f32 %v1012, %v1012
        %v1015 = vmul.f32 %v1013, %v1013
        %v1016 = vsel %vm647, %v1014, 0.0
        %1017 = vadd.xlane.f32.xlu0 %v1016
        %v1018 = vpop.xlane.xlu0 %1017
        %v1019 = vsel %vm647, %v1015, 0.0
        %1020 = vadd.xlane.f32.xlu0 %v1019
        %v1021 = vpop.xlane.xlu0 %1020
        %v1022 = vmul.f32 %v1018, %v1009
        %v1023 = vmul.f32 %v1021, %v1009
        %v1024 = vadd.f32 %v1022, 1e-05
        %v1025 = vadd.f32 %v1023, 1e-05
        %v1026 = vrsqrt.pop %v1024
        %v1027 = vmul.f32 %v1026, %v1024
        %v1028 = vmul.f32 %v1027, %v1026
        %v1029 = vmul.f32 0.5, %v1028
        %v1030 = vsub.f32 1.5, %v1029
        %v1031 = vmul.f32 %v1026, %v1030
        %vm1032 = vweird.f32 %v1024
        %vm1033 = vweird.f32 %v1026
        %vm1034 = vmor %vm1032, %vm1033
        %v1035 = vsel %vm1034, %v1026, %v1031
        %v1036 = vrsqrt.pop %v1025
        %v1037 = vmul.f32 %v1036, %v1025
        %v1038 = vmul.f32 %v1037, %v1036
        %v1039 = vmul.f32 0.5, %v1038
        %v1040 = vsub.f32 1.5, %v1039
        %v1041 = vmul.f32 %v1036, %v1040
        %vm1042 = vweird.f32 %v1025
        %vm1043 = vweird.f32 %v1036
        %vm1044 = vmor %vm1042, %vm1043
        %v1045 = vsel %vm1044, %v1036, %v1041
        %v1046 = vmul.f32 %v1012, %v1035
        %v1047 = vmul.f32 %v1013, %v1045
        %v1049 = vperm.slane %v581, 0
        %v1051 = vmul.f32 %v1046, %v1049
        %v1052 = vmul.f32 %v1047, %v1049
        %v1054 = vperm.slane %v582, 0
        %v1056 = vadd.f32 %v1051, %v1054
        %v1057 = vadd.f32 %v1052, %v1054
        %1059 = vset.pattern.permute.xlu0 0
        %1060 = vperm.xlu0 %1059, %v636
        %v1061 = vpop.permute.xlu0 %1060
        %1064 = vset.pattern.permute.xlu0 0
        %1065 = vperm.xlu0 %1064, %v637
        %v1066 = vpop.permute.xlu0 %1065
        %v1068 = vmul.f32 %v1056, %v1061
        %v1069 = vmul.f32 %v1057, %v1066
        %1070 = vst.msk [vmem:[#allocation2 + $0x4] sm:$0xff] %vm647, %v1068
        %1071 = vst.msk [vmem:[#allocation2 + $0xc] sm:$0xff] %vm647, %v1069
        %v1072 = vld [vmem:[#allocation2] sm:$0xff]
        %v1073 = vld [vmem:[#allocation2 + $0x8] sm:$0xff]
        %v1074 = vld [vmem:[#allocation2 + $0x1] sm:$0xff]
        %v1075 = vld [vmem:[#allocation2 + $0x9] sm:$0xff]
        %v1076 = vld [vmem:[#allocation2 + $0x2] sm:$0xff]
        %v1077 = vld [vmem:[#allocation2 + $0xa] sm:$0xff]
        %v1078 = vld [vmem:[#allocation2 + $0x3] sm:$0xff]
        %v1079 = vld [vmem:[#allocation2 + $0xb] sm:$0xff]
        %v1080 = vld [vmem:[#allocation2 + $0x4] sm:$0xff]
        %v1081 = vld [vmem:[#allocation2 + $0xc] sm:$0xff]
        %v1082 = vld [vmem:[#allocation2 + $0x5] sm:$0xff]
        %v1083 = vld [vmem:[#allocation2 + $0xd] sm:$0xff]
        %v1084 = vld [vmem:[#allocation2 + $0x6] sm:$0xff]
        %v1085 = vld [vmem:[#allocation2 + $0xe] sm:$0xff]
        %v1086 = vld [vmem:[#allocation2 + $0x7] sm:$0xff]
        %v1087 = vld [vmem:[#allocation2 + $0xf] sm:$0xff]
        %v1088 = vld [vmem:[#allocation2 + $0x10] sm:$0xff]
        %1091 = vrot.lane.b32.xlu0 %v1074, 32
        %v1092 = vpop.permute.xlu0 %1091
        %1093 = vrot.lane.b32.xlu0 %v1075, 32
        %v1094 = vpop.permute.xlu0 %1093
        %1099 = vrot.lane.b32.xlu0 %v1076, 64
        %v1100 = vpop.permute.xlu0 %1099
        %1101 = vrot.lane.b32.xlu0 %v1077, 64
        %v1102 = vpop.permute.xlu0 %1101
        %1107 = vrot.lane.b32.xlu0 %v1078, 96
        %v1108 = vpop.permute.xlu0 %1107
        %1109 = vrot.lane.b32.xlu0 %v1079, 96
        %v1110 = vpop.permute.xlu0 %1109
        %1115 = vrot.lane.b32.xlu0 %v1082, 32
        %v1116 = vpop.permute.xlu0 %1115
        %1117 = vrot.lane.b32.xlu0 %v1083, 32
        %v1118 = vpop.permute.xlu0 %1117
        %1123 = vrot.lane.b32.xlu0 %v1084, 64
        %v1124 = vpop.permute.xlu0 %1123
        %1125 = vrot.lane.b32.xlu0 %v1085, 64
        %v1126 = vpop.permute.xlu0 %1125
        %1131 = vrot.lane.b32.xlu0 %v1086, 96
        %v1132 = vpop.permute.xlu0 %1131
        %1133 = vrot.lane.b32.xlu0 %v1087, 96
        %v1134 = vpop.permute.xlu0 %1133
        %v1137 = vsel %vm647, %v1072, %v1092
        %v1138 = vsel %vm647, %v1073, %v1094
        %vm1139 = vcmask 523264
        %v1140 = vsel %vm1139, %v1137, %v1100
        %v1141 = vsel %vm1139, %v1138, %v1102
        %vm1142 = vcmask 785408
        %v1143 = vsel %vm1142, %v1140, %v1108
        %v1144 = vsel %vm1142, %v1141, %v1110
        %v1145 = vsel %vm647, %v1080, %v1116
        %v1146 = vsel %vm647, %v1081, %v1118
        %v1147 = vsel %vm1139, %v1145, %v1124
        %v1148 = vsel %vm1139, %v1146, %v1126
        %v1149 = vsel %vm1142, %v1147, %v1132
        %v1150 = vsel %vm1142, %v1148, %v1134
        %v1152 = vperm.slane %v619, 0
        %v1155 = vsel %vm647, %v1073, 0
        %v1158 = vsel %vm647, %v1088, 0
        %1160 = vmatpush.msra.mxu0 %v598
        %1161 = vmatpush.msra.mxu0 %v597
        %1162 = vmatpush.msra.mxu0 %v596
        %1163 = vmatpush.msra.mxu0 %v595
        %1164 = vmatpush.msra.mxu0 %v594
        %1165 = vmatpush.msra.mxu0 %v593
        %1166 = vmatpush.msra.mxu0 %v592
        %1167 = vmatpush.msra.mxu0 %v591
        %1168 = vmatpush.msra.mxu0 %v590
        %1169 = vmatpush.msra.mxu0 %v589
        %1170 = vmatpush.msra.mxu0 %v588
        %1171 = vmatpush.msra.mxu0 %v587
        %1172 = vmatpush.msra.mxu0 %v586
        %1173 = vmatpush.msra.mxu0 %v585
        %1174 = vmatpush.msra.mxu0 %v584
        %1175 = vmatpush.msra.mxu0 %v583
        %1176 = vmatmul.f32.gmra.mxu0 %v1143
        %v1177 = vpop.f32.mrf.mxu0
        %v1178 = vadd.f32 %v1152, %v1177
        %1179 = vmatmul.f32.gmra.mxu0 %v1144
        %v1180 = vpop.f32.mrf.mxu0
        %v1181 = vadd.f32 %v1152, %v1180
        %1182 = vdwg.mxu0
        %1183 = vmatpush.msra.mxu0 %v614
        %1184 = vmatpush.msra.mxu0 %v613
        %1185 = vmatpush.msra.mxu0 %v612
        %1186 = vmatpush.msra.mxu0 %v611
        %1187 = vmatpush.msra.mxu0 %v610
        %1188 = vmatpush.msra.mxu0 %v609
        %1189 = vmatpush.msra.mxu0 %v608
        %1190 = vmatpush.msra.mxu0 %v607
        %1191 = vmatpush.msra.mxu0 %v606
        %1192 = vmatpush.msra.mxu0 %v605
        %1193 = vmatpush.msra.mxu0 %v604
        %1194 = vmatpush.msra.mxu0 %v603
        %1195 = vmatpush.msra.mxu0 %v602
        %1196 = vmatpush.msra.mxu0 %v601
        %1197 = vmatpush.msra.mxu0 %v600
        %1198 = vmatpush.msra.mxu0 %v599
        %1199 = vmatmul.f32.gmra.mxu0 %v1149
        %v1200 = vpop.f32.mrf.mxu0
        %v1201 = vadd.f32 %v1178, %v1200
        %1202 = vmatmul.f32.gmra.mxu0 %v1150
        %v1203 = vpop.f32.mrf.mxu0
        %v1204 = vadd.f32 %v1181, %v1203
        %1205 = vdwg.mxu0
        %1206 = vmatpush.msra.mxu0 0.0
        %1207 = vmatpush.msra.mxu0 0.0
        %1208 = vmatpush.msra.mxu0 0.0
        %1209 = vmatpush.msra.mxu0 0.0
        %1210 = vmatpush.msra.mxu0 0.0
        %1211 = vmatpush.msra.mxu0 0.0
        %1212 = vmatpush.msra.mxu0 0.0
        %1213 = vmatpush.msra.mxu0 0.0
        %1214 = vmatpush.msra.mxu0 0.0
        %1215 = vmatpush.msra.mxu0 0.0
        %1216 = vmatpush.msra.mxu0 0.0
        %1217 = vmatpush.msra.mxu0 0.0
        %1218 = vmatpush.msra.mxu0 %v618
        %1219 = vmatpush.msra.mxu0 %v617
        %1220 = vmatpush.msra.mxu0 %v616
        %1221 = vmatpush.msra.mxu0 %v615
        %1222 = vmatmul.f32.gmra.mxu0 %v1155
        %v1223 = vpop.f32.mrf.mxu0
        %v1224 = vadd.f32 %v1201, %v1223
        %1225 = vmatmul.f32.gmra.mxu0 %v1158
        %v1226 = vpop.f32.mrf.mxu0
        %v1227 = vadd.f32 %v1204, %v1226
        %1228 = vdwg.mxu0
        %v1229 = vmax.f32 %v1224, 0.0
        %v1230 = vmax.f32 %v1227, 0.0
        %v1232 = vperm.slane %v628, 0
        %v1235 = vsel %vm1139, %v1229, 0
        %v1238 = vsel %vm1139, %v1230, 0
        %1240 = vmatpush.msra.mxu0 0.0
        %1241 = vmatpush.msra.mxu0 0.0
        %1242 = vmatpush.msra.mxu0 0.0
        %1243 = vmatpush.msra.mxu0 0.0
        %1244 = vmatpush.msra.mxu0 0.0
        %1245 = vmatpush.msra.mxu0 0.0
        %1246 = vmatpush.msra.mxu0 0.0
        %1247 = vmatpush.msra.mxu0 0.0
        %1248 = vmatpush.msra.mxu0 %v627
        %1249 = vmatpush.msra.mxu0 %v626
        %1250 = vmatpush.msra.mxu0 %v625
        %1251 = vmatpush.msra.mxu0 %v624
        %1252 = vmatpush.msra.mxu0 %v623
        %1253 = vmatpush.msra.mxu0 %v622
        %1254 = vmatpush.msra.mxu0 %v621
        %1255 = vmatpush.msra.mxu0 %v620
        %1256 = vmatmul.f32.gmra.mxu0 %v1235
        %v1257 = vpop.f32.mrf.mxu0
        %v1258 = vadd.f32 %v1232, %v1257
        %1259 = vmatmul.f32.gmra.mxu0 %v1238
        %v1260 = vpop.f32.mrf.mxu0
        %v1261 = vadd.f32 %v1232, %v1260
        %1262 = vdwg.mxu0
        %v1263 = vadd.f32 %v1258, %v1068
        %v1264 = vadd.f32 %v1261, %v1069
        %v1265 = vsel %vm647, %v1263, 0.0
        %1266 = vadd.xlane.f32.xlu0 %v1265
        %v1267 = vpop.xlane.xlu0 %1266
        %v1268 = vsel %vm647, %v1264, 0.0
        %1269 = vadd.xlane.f32.xlu0 %v1268
        %v1270 = vpop.xlane.xlu0 %1269
        %v1271 = vmul.f32 %v1267, %v1009
        %v1272 = vmul.f32 %v1270, %v1009
        %v1273 = vsub.f32 %v1263, %v1271
        %v1274 = vsub.f32 %v1264, %v1272
        %v1275 = vmul.f32 %v1273, %v1273
        %v1276 = vmul.f32 %v1274, %v1274
        %v1277 = vsel %vm647, %v1275, 0.0
        %1278 = vadd.xlane.f32.xlu0 %v1277
        %v1279 = vpop.xlane.xlu0 %1278
        %v1280 = vsel %vm647, %v1276, 0.0
        %1281 = vadd.xlane.f32.xlu0 %v1280
        %v1282 = vpop.xlane.xlu0 %1281
        %v1283 = vmul.f32 %v1279, %v1009
        %v1284 = vmul.f32 %v1282, %v1009
        %v1285 = vadd.f32 %v1283, 1e-05
        %v1286 = vadd.f32 %v1284, 1e-05
        %v1287 = vrsqrt.pop %v1285
        %v1288 = vmul.f32 %v1287, %v1285
        %v1289 = vmul.f32 %v1288, %v1287
        %v1290 = vmul.f32 0.5, %v1289
        %v1291 = vsub.f32 1.5, %v1290
        %v1292 = vmul.f32 %v1287, %v1291
        %vm1293 = vweird.f32 %v1285
        %vm1294 = vweird.f32 %v1287
        %vm1295 = vmor %vm1293, %vm1294
        %v1296 = vsel %vm1295, %v1287, %v1292
        %v1297 = vrsqrt.pop %v1286
        %v1298 = vmul.f32 %v1297, %v1286
        %v1299 = vmul.f32 %v1298, %v1297
        %v1300 = vmul.f32 0.5, %v1299
        %v1301 = vsub.f32 1.5, %v1300
        %v1302 = vmul.f32 %v1297, %v1301
        %vm1303 = vweird.f32 %v1286
        %vm1304 = vweird.f32 %v1297
        %vm1305 = vmor %vm1303, %vm1304
        %v1306 = vsel %vm1305, %v1297, %v1302
        %v1307 = vmul.f32 %v1273, %v1296
        %v1308 = vmul.f32 %v1274, %v1306
        %v1310 = vperm.slane %v629, 0
        %v1312 = vmul.f32 %v1307, %v1310
        %v1313 = vmul.f32 %v1308, %v1310
        %v1315 = vperm.slane %v630, 0
        %v1317 = vadd.f32 %v1312, %v1315
        %v1318 = vadd.f32 %v1313, %v1315
        %v1319 = vmul.f32 %v1317, %v1061
        %v1320 = vmul.f32 %v1318, %v1066
        %1321 = vst.msk [vmem:[%s548] sm:$0xff] %vm647, %v1319
        %1322 = vst.msk [vmem:[%s548 + $0x8] sm:$0xff] %vm647, %v1320
        %s1323 = sand.u32 %s372, 1
        %s1324 = scalar_lea.sflag [#allocation4], %s1323
        %s1325 = sand.u32 %s372, 1
        %s1326 = smul.addr %s1325, 16
        %s1327 = scalar_lea.vmem [#allocation3], %s1326
        %s1328 = sand.u32 %s398, 1
        %s1329 = scalar_lea.sflag [#allocation6], %s1328
        %s1330 = sand.u32 %s398, 1
        %s1331 = smul.addr %s1330, 16
        %s1332 = scalar_lea.vmem [#allocation5], %s1331
        // Predicated region
        $region81: #{tpu_custom_call.1} parent=79 // pred_check
          %p1333 = pneg %p382
        $region82: #{tpu_custom_call.1} parent=79 // pred_check_branch
          %1335 = sbr.rel (%p1333) target = $region84
        $region83: #{tpu_custom_call.1} parent=79 // pred_region
          %1337 = vsyncadd %s1324, 0
          %s1338 = smul.addr %s34, 2
          %s1339 = smul.addr %s1338, 8
          %s1340 = scalar_lea.hbm %s15, %s1339
          %s1341 = sshll.u32 %s1327, 4
          %s1342 = int_to_ptr.vmem [resolvable:$true] %s1341
          %s1343 = sshll.u32 %s1340, 4
          %s1344 = int_to_ptr.hbm [resolvable:$true] %s1343
          %1349 = dma.vmem_to_hbm [thread:$0]  %s1342, 256, %s1344, %s1324, 128, 128, 8
        $region84: #{tpu_custom_call.1} parent=79 // pred_fallthru
          _
        // Predicated region
        $region85: #{tpu_custom_call.1} parent=79 // pred_check
          %p1350 = pneg %p408
        $region86: #{tpu_custom_call.1} parent=79 // pred_check_branch
          %1352 = sbr.rel (%p1350) target = $region88
        $region87: #{tpu_custom_call.1} parent=79 // pred_region
          %1354 = vsyncadd %s1329, 0
          %s1355 = smul.addr %s34, 2
          %s1356 = smul.addr %s1355, 8
          %s1357 = scalar_lea.hbm %s16, %s1356
          %s1358 = sshll.u32 %s1332, 4
          %s1359 = int_to_ptr.vmem [resolvable:$true] %s1358
          %s1360 = sshll.u32 %s1357, 4
          %s1361 = int_to_ptr.hbm [resolvable:$true] %s1360
          %1366 = dma.vmem_to_hbm [thread:$0]  %s1359, 256, %s1361, %s1329, 128, 128, 8
        $region88: #{tpu_custom_call.1} parent=79 // pred_fallthru
          _
      $region80: #{tpu_custom_call.1} parent=5 // pred_fallthru
        _
      %p1367 = scmp.le.s32.totalorder 2, %s29
      // Predicated region
      $region89: #{tpu_custom_call.1} parent=5 // pred_check
        %p1368 = pneg %p1367
      $region90: #{tpu_custom_call.1} parent=5 // pred_check_branch
        %1370 = sbr.rel (%p1368) target = $region92
      $region91: #{tpu_custom_call.1} parent=5 // pred_region
        %s1371 = ssub.s32 %s29, 2
        // Predicated region
        $region93: #{tpu_custom_call.1} parent=91 // pred_check
          %p1372 = pneg %p388
        $region94: #{tpu_custom_call.1} parent=91 // pred_check_branch
          %1374 = sbr.rel (%p1372) target = $region96
        $region95: #{tpu_custom_call.1} parent=91 // pred_region
          %s1375 = sand.u32 %s373, 1
          %s1376 = scalar_lea.sflag [#allocation4], %s1375
          %s1377 = sand.u32 %s373, 1
          %s1378 = smul.addr %s1377, 16
          %s1379 = scalar_lea.vmem [#allocation3], %s1378
          %1381 = dma.done %s1376, 256
        $region96: #{tpu_custom_call.1} parent=91 // pred_fallthru
          _
        // Predicated region
        $region97: #{tpu_custom_call.1} parent=91 // pred_check
          %p1382 = pneg %p414
        $region98: #{tpu_custom_call.1} parent=91 // pred_check_branch
          %1384 = sbr.rel (%p1382) target = $region100
        $region99: #{tpu_custom_call.1} parent=91 // pred_region
          %s1385 = sand.u32 %s399, 1
          %s1386 = scalar_lea.sflag [#allocation6], %s1385
          %s1387 = sand.u32 %s399, 1
          %s1388 = smul.addr %s1387, 16
          %s1389 = scalar_lea.vmem [#allocation5], %s1388
          %1391 = dma.done %s1386, 256
        $region100: #{tpu_custom_call.1} parent=91 // pred_fallthru
          _
      $region92: #{tpu_custom_call.1} parent=5 // pred_fallthru
        _
    $region6: #{tpu_custom_call.1} parent=1 // loop_footer
      %s33 = sadd.s32 1, %s29
    $region7: #{tpu_custom_call.1} parent=1 // loop_footer_branch
      %28 = sbr.rel target = $region3
    $region8: #{tpu_custom_call.1} parent=1 // loop_exit
      _
    %1392 = vsyncpa [#allocation4], 1
    %s1393 = scalar_lea.sflag [#allocation4], 1
    %1394 = vsyncpa %s1393, 1
    %1395 = vsyncpa [#allocation6], 1
    %s1396 = scalar_lea.sflag [#allocation6], 1
    %1397 = vsyncpa %s1396, 1

</llo_original>
